<compile_context>
chip_gen: v7x
topology: tpu7x:2x2x1
jax: 0.10.0
libtpu: 0.0.40
codegen_flags: <defaults>
</compile_context>

<pallas_src>
import functools

import jax
import jax.numpy as jnp
from jax import lax
from jax.experimental import pallas as pl
from jax.experimental.pallas import tpu as pltpu

LN_EPS = 1e-5       # PyTorch nn.LayerNorm default
LANE = 128
SUBLANE = 8


def _round_up(n, m):
    return ((n + m - 1) // m) * m


def _cdiv(a, b):
    return (a + b - 1) // b


# ----------------------------------------------------------------------------
# Kernel
# ----------------------------------------------------------------------------
def _layernorm_onepass(h, gamma, beta, n_true):
    """One-pass LayerNorm. Padded lanes of h/gamma/beta are exactly zero, so
    summing over the padded width equals summing over the true width; the
    divisor is the TRUE feature count. f32 throughout."""
    s = jnp.sum(h, axis=-1, keepdims=True)
    ssq = jnp.sum(h * h, axis=-1, keepdims=True)
    inv_n = 1.0 / n_true
    mu = s * inv_n
    var = jnp.maximum(ssq * inv_n - mu * mu, 0.0)   # clamp: one-pass stability
    return (h - mu) * lax.rsqrt(var + LN_EPS) * gamma + beta


def actor_kernel(x_ref, w1_ref, w2_ref, w3_ref, pp_ref, out_ref, *,
                 h1_true, h2_true, h1_pad, h2_pad, a_pad):
    # Packed (1, N) f32 parameter rows (static slices, zero runtime cost).
    b1 = pp_ref[0:1, 0:h1_pad]
    g1 = pp_ref[1:2, 0:h1_pad]
    be1 = pp_ref[2:3, 0:h1_pad]
    b2 = pp_ref[3:4, 0:h2_pad]
    g2 = pp_ref[4:5, 0:h2_pad]
    be2 = pp_ref[5:6, 0:h2_pad]
    b3 = pp_ref[6:7, 0:a_pad]

    x = x_ref[...]                                # (TB, S_P) bf16

    # fc1 -> ln1 -> relu     (bf16 MXU matmul, f32 accumulate / elementwise)
    h1 = jnp.dot(x, w1_ref[...], preferred_element_type=jnp.float32) + b1
    h1 = jnp.maximum(_layernorm_onepass(h1, g1, be1, h1_true), 0.0)

    # fc2 -> ln2 -> relu
    h2 = jnp.dot(h1.astype(jnp.bfloat16), w2_ref[...],
                 preferred_element_type=jnp.float32) + b2
    h2 = jnp.maximum(_layernorm_onepass(h2, g2, be2, h2_true), 0.0)

    # output -> tanh   (tanh already lies in [-1, 1]; the clamp is redundant)
    a = jnp.dot(h2.astype(jnp.bfloat16), w3_ref[...],
                preferred_element_type=jnp.float32) + b3
    out_ref[...] = jnp.tanh(a).astype(out_ref.dtype)


# ----------------------------------------------------------------------------
# Parameter setup
# ----------------------------------------------------------------------------
def init_actor_params(key, state_size, action_size,
                      fc1_units=400, fc2_units=300):
    """f32 params mimicking PyTorch nn.Linear defaults
    (uniform(-1/sqrt(fan_in), 1/sqrt(fan_in))). Weights stored (in, out)."""
    def linear(k, fan_in, fan_out):
        kw, kb = jax.random.split(k)
        bound = 1.0 / jnp.sqrt(float(fan_in))
        w = jax.random.uniform(kw, (fan_in, fan_out), jnp.float32, -bound, bound)
        b = jax.random.uniform(kb, (fan_out,), jnp.float32, -bound, bound)
        return w, b

    k1, k2, k3 = jax.random.split(key, 3)
    w1, b1 = linear(k1, state_size, fc1_units)
    w2, b2 = linear(k2, fc1_units, fc2_units)
    w3, b3 = linear(k3, fc2_units, action_size)
    return dict(
        w1=w1, b1=b1, g1=jnp.ones((fc1_units,), jnp.float32),
        be1=jnp.zeros((fc1_units,), jnp.float32),
        w2=w2, b2=b2, g2=jnp.ones((fc2_units,), jnp.float32),
        be2=jnp.zeros((fc2_units,), jnp.float32),
        w3=w3, b3=b3,
        state_size=state_size, action_size=action_size,
        fc1_units=fc1_units, fc2_units=fc2_units,
    )


def prepare_actor_params(p):
    """Pad feature dims, cast weights to bf16, pack the small rows.

    The state (K) dim is only rounded to a multiple of 32 (bf16 sublane
    packing), NOT to 128 -- the x tile's last dim equals the full array dim
    and w1's leading dim is sublane-aligned, so no lane padding is needed and
    the dominant weight DMA shrinks accordingly.
    Hidden/output dims stay 128-padded (lane-dense matmuls / unmasked vst).
    Padded gamma/beta/bias/weight lanes MUST be zero (LayerNorm correctness).
    """
    S, A = p["state_size"], p["action_size"]
    H1, H2 = p["fc1_units"], p["fc2_units"]
    S_P = _round_up(S, 32)
    H1P, H2P, AP = (_round_up(H1, LANE), _round_up(H2, LANE),
                    _round_up(A, LANE))
    PW = max(H1P, H2P, AP)

    def pad2(w, r, c):
        return jnp.zeros((r, c), w.dtype).at[:w.shape[0], :w.shape[1]].set(w)

    def padrow(v, width):
        return jnp.zeros((width,), jnp.float32).at[:v.shape[0]].set(v)

    w1 = pad2(p["w1"], S_P, H1P).astype(jnp.bfloat16)
    w2 = pad2(p["w2"], H1P, H2P).astype(jnp.bfloat16)
    w3 = pad2(p["w3"], H2P, AP).astype(jnp.bfloat16)
    # TODO(synk): on v7x only, w2 could be stored fp8 + per-column scale to
    # halve the dominant weight DMA (v5e/v6e MXUs do not take fp8).

    pp = jnp.stack([
        padrow(p["b1"], PW), padrow(p["g1"], PW), padrow(p["be1"], PW),
        padrow(p["b2"], PW), padrow(p["g2"], PW), padrow(p["be2"], PW),
        padrow(p["b3"], PW), jnp.zeros((PW,), jnp.float32),
    ], axis=0)                                       # (8, PW) f32

    return dict(w1=w1, w2=w2, w3=w3, pp=pp,
                state_size=S, action_size=A, fc1_units=H1, fc2_units=H2,
                S_P=S_P, H1P=H1P, H2P=H2P, AP=AP, PW=PW)


# ----------------------------------------------------------------------------
# Batch tiling
# ----------------------------------------------------------------------------
def _choose_batch_tiling(B, batch_tile):
    """Pick (padded_batch, tile) such that:
      * tile is a multiple of 8 and <= batch_tile,
      * the grid has >= 2 steps whenever there are >= 2 sublane-tiles of rows
        (so v7x's second TensorCore gets a shard),
      * padding never exceeds one (sublane-rounded) tile of slack."""
    batch_tile = max(SUBLANE, _round_up(batch_tile, SUBLANE))
    bp8 = _round_up(max(B, SUBLANE), SUBLANE)
    min_steps = 2 if bp8 >= 2 * SUBLANE else 1
    steps = max(min_steps, _cdiv(bp8, batch_tile))
    tb = _round_up(_cdiv(bp8, steps), SUBLANE)
    steps = _cdiv(bp8, tb)
    return tb * steps, tb


# ----------------------------------------------------------------------------
# Forward wrapper
# ----------------------------------------------------------------------------
def actor_forward(state, kp, *, batch_tile=512):
    B = state.shape[0]
    S, A = kp["state_size"], kp["action_size"]
    S_P, H1P, H2P, AP, PW = kp["S_P"], kp["H1P"], kp["H2P"], kp["AP"], kp["PW"]

    BP, tb = _choose_batch_tiling(B, batch_tile)

    # Pad batch rows to BP and state features to S_P (padded entries zero).
    x = jnp.zeros((BP, S_P), jnp.bfloat16).at[:B, :S].set(
        state.astype(jnp.bfloat16))

    kernel = functools.partial(
        actor_kernel,
        h1_true=float(kp["fc1_units"]), h2_true=float(kp["fc2_units"]),
        h1_pad=H1P, h2_pad=H2P, a_pad=AP)

    out = pl.pallas_call(
        kernel,
        out_shape=jax.ShapeDtypeStruct((BP, AP), jnp.float32),
        grid_spec=pltpu.PrefetchScalarGridSpec(
            num_scalar_prefetch=0,
            grid=(BP // tb,),
            in_specs=[
                pl.BlockSpec((tb, S_P), lambda i: (i, 0)),    # state tile
                pl.BlockSpec((S_P, H1P), lambda i: (0, 0)),   # w1 (resident)
                pl.BlockSpec((H1P, H2P), lambda i: (0, 0)),   # w2 (resident)
                pl.BlockSpec((H2P, AP), lambda i: (0, 0)),    # w3 (resident)
                pl.BlockSpec((8, PW), lambda i: (0, 0)),      # packed rows
            ],
            out_specs=pl.BlockSpec((tb, AP), lambda i: (i, 0)),
        ),
        compiler_params=pltpu.CompilerParams(
            dimension_semantics=("parallel",)),   # >=2 steps -> both v7x TCs
    )(x, kp["w1"], kp["w2"], kp["w3"], kp["pp"])

    # TODO(synk): for per-env-step B~1-8 inference, keep w1/w2/w3/pp
    # VMEM-resident across calls (cross-pallas_call DMA + semaphore futures)
    # instead of re-DMA'ing ~0.5 MiB of weights every step.
    return out[:B, :A]


# ----------------------------------------------------------------------------
# Pure-JAX references
# ----------------------------------------------------------------------------
def _layernorm_ref(h, gamma, beta):
    mu = jnp.mean(h, axis=-1, keepdims=True)
    var = jnp.mean((h - mu) ** 2, axis=-1, keepdims=True)
    return (h - mu) * lax.rsqrt(var + LN_EPS) * gamma + beta


def actor_reference_f32(state, p):
    """Exact f32 semantics of the PyTorch module (clamp kept; it is a no-op)."""
    h1 = jnp.maximum(_layernorm_ref(state @ p["w1"] + p["b1"], p["g1"], p["be1"]), 0.0)
    h2 = jnp.maximum(_layernorm_ref(h1 @ p["w2"] + p["b2"], p["g2"], p["be2"]), 0.0)
    return jnp.clip(jnp.tanh(h2 @ p["w3"] + p["b3"]), -1.0, 1.0)


def actor_reference_bf16(state, p):
    """Same bf16-weight / f32-accumulate numerics path as the kernel."""
    def mm(a, w):
        return jnp.dot(a.astype(jnp.bfloat16), w.astype(jnp.bfloat16),
                       preferred_element_type=jnp.float32)
    h1 = jnp.maximum(_layernorm_ref(mm(state, p["w1"]) + p["b1"], p["g1"], p["be1"]), 0.0)
    h2 = jnp.maximum(_layernorm_ref(mm(h1, p["w2"]) + p["b2"], p["g2"], p["be2"]), 0.0)
    return jnp.tanh(mm(h2, p["w3"]) + p["b3"])


# ----------------------------------------------------------------------------
if __name__ == "__main__":
    # batch=64 fills sublanes/lanes and (via adaptive tiling) yields a 2-step
    # batch grid, exercising the megacore "parallel" path.
    batch, state_size, action_size = 64, 32, 4

    key = jax.random.PRNGKey(0)
    k_params, k_state = jax.random.split(key)

    raw = init_actor_params(k_params, state_size, action_size)   # fc 400/300
    kparams = prepare_actor_params(raw)
    state = jax.random.normal(k_state, (batch, state_size), jnp.float32)

    out = jax.block_until_ready(actor_forward(state, kparams))

    ref_bf16 = actor_reference_bf16(state, raw)   # matches kernel numerics
    ref_f32 = actor_reference_f32(state, raw)     # original f32 semantics

    assert out.shape == (batch, action_size)
    assert bool(jnp.allclose(out, ref_bf16, atol=5e-3, rtol=0.0)), \
        float(jnp.max(jnp.abs(out - ref_bf16)))
    assert bool(jnp.allclose(out, ref_f32, atol=5e-2, rtol=0.0)), \
        float(jnp.max(jnp.abs(out - ref_f32)))
    print("KERNEL_OK")
</pallas_src>

<mosaic_0001>
module attributes {stable_mosaic.version = 11 : i64} {
  func.func @actor_kernel(%arg0: i32, %arg1: memref<32x32xbf16, #tpu.memory_space<vmem>>, %arg2: memref<32x512xbf16, #tpu.memory_space<vmem>>, %arg3: memref<512x384xbf16, #tpu.memory_space<vmem>>, %arg4: memref<384x128xbf16, #tpu.memory_space<vmem>>, %arg5: memref<8x512xf32, #tpu.memory_space<vmem>>, %arg6: memref<32x128xf32, #tpu.memory_space<vmem>>) attributes {dimension_semantics = [#tpu.dimension_semantics<parallel>], iteration_bounds = array<i64: 2>, scalar_prefetch = 0 : i64, scratch_operands = 0 : i64, tpu.core_type = #tpu.core_type<tc>, window_params = [{transform_indices = @transform_0, window_bounds = array<i64: 32, 32>}, {pipeline_mode = #tpu.pipeline_mode<synchronous>, transform_indices = @transform_1, window_bounds = array<i64: 32, 512>}, {pipeline_mode = #tpu.pipeline_mode<synchronous>, transform_indices = @transform_2, window_bounds = array<i64: 512, 384>}, {pipeline_mode = #tpu.pipeline_mode<synchronous>, transform_indices = @transform_3, window_bounds = array<i64: 384, 128>}, {pipeline_mode = #tpu.pipeline_mode<synchronous>, transform_indices = @transform_4, window_bounds = array<i64: 8, 512>}, {transform_indices = @transform_5, window_bounds = array<i64: 32, 128>}]} {
    %c0 = arith.constant 0 : index
    %c0_0 = arith.constant 0 : index
    %0 = vector.load %arg5[%c0, %c0_0] : memref<8x512xf32, #tpu.memory_space<vmem>>, vector<1x512xf32>
    %c1 = arith.constant 1 : index
    %c0_1 = arith.constant 0 : index
    %1 = vector.load %arg5[%c1, %c0_1] : memref<8x512xf32, #tpu.memory_space<vmem>>, vector<1x512xf32>
    %c2 = arith.constant 2 : index
    %c0_2 = arith.constant 0 : index
    %2 = vector.load %arg5[%c2, %c0_2] : memref<8x512xf32, #tpu.memory_space<vmem>>, vector<1x512xf32>
    %c3 = arith.constant 3 : index
    %c0_3 = arith.constant 0 : index
    %3 = vector.load %arg5[%c3, %c0_3] : memref<8x512xf32, #tpu.memory_space<vmem>>, vector<1x384xf32>
    %c4 = arith.constant 4 : index
    %c0_4 = arith.constant 0 : index
    %4 = vector.load %arg5[%c4, %c0_4] : memref<8x512xf32, #tpu.memory_space<vmem>>, vector<1x384xf32>
    %c5 = arith.constant 5 : index
    %c0_5 = arith.constant 0 : index
    %5 = vector.load %arg5[%c5, %c0_5] : memref<8x512xf32, #tpu.memory_space<vmem>>, vector<1x384xf32>
    %c6 = arith.constant 6 : index
    %c0_6 = arith.constant 0 : index
    %6 = vector.load %arg5[%c6, %c0_6] : memref<8x512xf32, #tpu.memory_space<vmem>>, vector<1x128xf32>
    %c0_7 = arith.constant 0 : index
    %c0_8 = arith.constant 0 : index
    %7 = vector.load %arg1[%c0_7, %c0_8] : memref<32x32xbf16, #tpu.memory_space<vmem>>, vector<32x32xbf16>
    %c0_9 = arith.constant 0 : index
    %c0_10 = arith.constant 0 : index
    %8 = vector.load %arg2[%c0_9, %c0_10] : memref<32x512xbf16, #tpu.memory_space<vmem>>, vector<32x512xbf16>
    %cst = arith.constant dense<0.000000e+00> : vector<32x512xf32>
    %9 = tpu.matmul %7, %8, %cst {dimension_numbers = #tpu.dot_dimension_numbers<[1], [0], [0], [1], [0, 0, 1, 1], [], []>} : vector<32x32xbf16>, vector<32x512xbf16>, vector<32x512xf32> -> vector<32x512xf32>
    %10 = vector.broadcast %0 : vector<1x512xf32> to vector<32x512xf32>
    %11 = arith.addf %9, %10 : vector<32x512xf32>
    %cst_11 = arith.constant dense<0.000000e+00> : vector<32xf32>
    %12 = vector.multi_reduction <add>, %11, %cst_11 [1] : vector<32x512xf32> to vector<32xf32>
    %13 = vector.shape_cast %12 : vector<32xf32> to vector<32x1xf32>
    %14 = arith.mulf %11, %11 : vector<32x512xf32>
    %cst_12 = arith.constant dense<0.000000e+00> : vector<32xf32>
    %15 = vector.multi_reduction <add>, %14, %cst_12 [1] : vector<32x512xf32> to vector<32xf32>
    %16 = vector.shape_cast %15 : vector<32xf32> to vector<32x1xf32>
    %cst_13 = arith.constant 2.500000e-03 : f32
    %17 = vector.broadcast %cst_13 : f32 to vector<32x1xf32>
    %18 = arith.mulf %13, %17 : vector<32x1xf32>
    %cst_14 = arith.constant 2.500000e-03 : f32
    %19 = vector.broadcast %cst_14 : f32 to vector<32x1xf32>
    %20 = arith.mulf %16, %19 : vector<32x1xf32>
    %21 = arith.mulf %18, %18 : vector<32x1xf32>
    %22 = arith.subf %20, %21 : vector<32x1xf32>
    %cst_15 = arith.constant 0.000000e+00 : f32
    %23 = vector.broadcast %cst_15 : f32 to vector<32x1xf32>
    %24 = arith.maximumf %22, %23 : vector<32x1xf32>
    %25 = vector.broadcast %18 : vector<32x1xf32> to vector<32x512xf32>
    %26 = arith.subf %11, %25 : vector<32x512xf32>
    %cst_16 = arith.constant 9.99999974E-6 : f32
    %27 = vector.broadcast %cst_16 : f32 to vector<32x1xf32>
    %28 = arith.addf %24, %27 : vector<32x1xf32>
    %29 = math.rsqrt %28 : vector<32x1xf32>
    %30 = vector.broadcast %29 : vector<32x1xf32> to vector<32x512xf32>
    %31 = arith.mulf %26, %30 : vector<32x512xf32>
    %32 = vector.broadcast %1 : vector<1x512xf32> to vector<32x512xf32>
    %33 = arith.mulf %31, %32 : vector<32x512xf32>
    %34 = vector.broadcast %2 : vector<1x512xf32> to vector<32x512xf32>
    %35 = arith.addf %33, %34 : vector<32x512xf32>
    %cst_17 = arith.constant 0.000000e+00 : f32
    %36 = vector.broadcast %cst_17 : f32 to vector<32x512xf32>
    %37 = arith.maximumf %35, %36 : vector<32x512xf32>
    %38 = arith.truncf %37 : vector<32x512xf32> to vector<32x512xbf16>
    %c0_18 = arith.constant 0 : index
    %c0_19 = arith.constant 0 : index
    %39 = vector.load %arg3[%c0_18, %c0_19] : memref<512x384xbf16, #tpu.memory_space<vmem>>, vector<512x384xbf16>
    %cst_20 = arith.constant dense<0.000000e+00> : vector<32x384xf32>
    %40 = tpu.matmul %38, %39, %cst_20 {dimension_numbers = #tpu.dot_dimension_numbers<[1], [0], [0], [1], [0, 0, 1, 1], [], []>} : vector<32x512xbf16>, vector<512x384xbf16>, vector<32x384xf32> -> vector<32x384xf32>
    %41 = vector.broadcast %3 : vector<1x384xf32> to vector<32x384xf32>
    %42 = arith.addf %40, %41 : vector<32x384xf32>
    %cst_21 = arith.constant dense<0.000000e+00> : vector<32xf32>
    %43 = vector.multi_reduction <add>, %42, %cst_21 [1] : vector<32x384xf32> to vector<32xf32>
    %44 = vector.shape_cast %43 : vector<32xf32> to vector<32x1xf32>
    %45 = arith.mulf %42, %42 : vector<32x384xf32>
    %cst_22 = arith.constant dense<0.000000e+00> : vector<32xf32>
    %46 = vector.multi_reduction <add>, %45, %cst_22 [1] : vector<32x384xf32> to vector<32xf32>
    %47 = vector.shape_cast %46 : vector<32xf32> to vector<32x1xf32>
    %cst_23 = arith.constant 0.00333333341 : f32
    %48 = vector.broadcast %cst_23 : f32 to vector<32x1xf32>
    %49 = arith.mulf %44, %48 : vector<32x1xf32>
    %cst_24 = arith.constant 0.00333333341 : f32
    %50 = vector.broadcast %cst_24 : f32 to vector<32x1xf32>
    %51 = arith.mulf %47, %50 : vector<32x1xf32>
    %52 = arith.mulf %49, %49 : vector<32x1xf32>
    %53 = arith.subf %51, %52 : vector<32x1xf32>
    %cst_25 = arith.constant 0.000000e+00 : f32
    %54 = vector.broadcast %cst_25 : f32 to vector<32x1xf32>
    %55 = arith.maximumf %53, %54 : vector<32x1xf32>
    %56 = vector.broadcast %49 : vector<32x1xf32> to vector<32x384xf32>
    %57 = arith.subf %42, %56 : vector<32x384xf32>
    %cst_26 = arith.constant 9.99999974E-6 : f32
    %58 = vector.broadcast %cst_26 : f32 to vector<32x1xf32>
    %59 = arith.addf %55, %58 : vector<32x1xf32>
    %60 = math.rsqrt %59 : vector<32x1xf32>
    %61 = vector.broadcast %60 : vector<32x1xf32> to vector<32x384xf32>
    %62 = arith.mulf %57, %61 : vector<32x384xf32>
    %63 = vector.broadcast %4 : vector<1x384xf32> to vector<32x384xf32>
    %64 = arith.mulf %62, %63 : vector<32x384xf32>
    %65 = vector.broadcast %5 : vector<1x384xf32> to vector<32x384xf32>
    %66 = arith.addf %64, %65 : vector<32x384xf32>
    %cst_27 = arith.constant 0.000000e+00 : f32
    %67 = vector.broadcast %cst_27 : f32 to vector<32x384xf32>
    %68 = arith.maximumf %66, %67 : vector<32x384xf32>
    %69 = arith.truncf %68 : vector<32x384xf32> to vector<32x384xbf16>
    %c0_28 = arith.constant 0 : index
    %c0_29 = arith.constant 0 : index
    %70 = vector.load %arg4[%c0_28, %c0_29] : memref<384x128xbf16, #tpu.memory_space<vmem>>, vector<384x128xbf16>
    %cst_30 = arith.constant dense<0.000000e+00> : vector<32x128xf32>
    %71 = tpu.matmul %69, %70, %cst_30 {dimension_numbers = #tpu.dot_dimension_numbers<[1], [0], [0], [1], [0, 0, 1, 1], [], []>} : vector<32x384xbf16>, vector<384x128xbf16>, vector<32x128xf32> -> vector<32x128xf32>
    %72 = vector.broadcast %6 : vector<1x128xf32> to vector<32x128xf32>
    %73 = arith.addf %71, %72 : vector<32x128xf32>
    %74 = math.tanh %73 : vector<32x128xf32>
    %c0_31 = arith.constant 0 : index
    %c0_32 = arith.constant 0 : index
    %75 = vector.load %arg6[%c0_31, %c0_32] : memref<32x128xf32, #tpu.memory_space<vmem>>, vector<32x128xf32>
    tpu.vector_store %arg6[%c0_31, %c0_32], %74 {strides = array<i32>} : memref<32x128xf32, #tpu.memory_space<vmem>>, vector<32x128xf32>,
    return
  }
  func.func @transform_0(%arg0: i32) -> (i32, i32) {
    %c0_i32 = arith.constant 0 : i32
    %c0_i32_0 = arith.constant 0 : i32
    return %arg0, %c0_i32 : i32, i32
  }
  func.func @transform_1(%arg0: i32) -> (i32, i32) {
    %c0_i32 = arith.constant 0 : i32
    %c0_i32_0 = arith.constant 0 : i32
    %c0_i32_1 = arith.constant 0 : i32
    return %c0_i32, %c0_i32_0 : i32, i32
  }
  func.func @transform_2(%arg0: i32) -> (i32, i32) {
    %c0_i32 = arith.constant 0 : i32
    %c0_i32_0 = arith.constant 0 : i32
    %c0_i32_1 = arith.constant 0 : i32
    return %c0_i32, %c0_i32_0 : i32, i32
  }
  func.func @transform_3(%arg0: i32) -> (i32, i32) {
    %c0_i32 = arith.constant 0 : i32
    %c0_i32_0 = arith.constant 0 : i32
    %c0_i32_1 = arith.constant 0 : i32
    return %c0_i32, %c0_i32_0 : i32, i32
  }
  func.func @transform_4(%arg0: i32) -> (i32, i32) {
    %c0_i32 = arith.constant 0 : i32
    %c0_i32_0 = arith.constant 0 : i32
    %c0_i32_1 = arith.constant 0 : i32
    return %c0_i32, %c0_i32_0 : i32, i32
  }
  func.func @transform_5(%arg0: i32) -> (i32, i32) {
    %c0_i32 = arith.constant 0 : i32
    %c0_i32_0 = arith.constant 0 : i32
    return %arg0, %c0_i32 : i32, i32
  }
}

</mosaic_0001>

<llo_original>
// kernel: tpu_custom_call.1
$region0: #{tpu_custom_call.1}
  #allocation0 [shape = 'u32[]', space=smem, size = 0x4, offset = 0x4, fixed_abs, tag = 'smem constant byte address 0x4 - core index']
  #allocation1 [shape = 'u32[144,128]{1,0:T(1,128)}', space=vmem, size = 0x12000, scoped, tag = 'internal scratch']
  %s0 = inlined_call_operand.vmem [shape: bf16[64,32], index: 0, kind: input, shape index: {}]
  %s1 = inlined_call_operand.hbm [shape: bf16[32,512], index: 1, kind: input, shape index: {}]
  %s2 = inlined_call_operand.hbm [shape: bf16[512,384], index: 2, kind: input, shape index: {}]
  %s3 = inlined_call_operand.hbm [shape: bf16[384,128], index: 3, kind: input, shape index: {}]
  %s4 = inlined_call_operand.vmem [shape: f32[8,512], index: 4, kind: input, shape index: {}]
  %s5 = inlined_call_operand.hbm [shape: f32[64,128], index: 5, kind: output, shape index: {}]
  %s6 = sld [smem:[#allocation0]]
  $region65: #{tpu_custom_call.1} parent=0
    _
  %s8 = ssub.s32 1, %s6
  %s9 = scalar_select 0, %s8, %s6
  $region1: #{tpu_custom_call.1} parent=0
    #allocation2 [shape = 'u8[32768]{0}', space=vmem, size = 0x8000, scoped, tag = 'input window, operand 1, single buffered']
    #allocation3 [shape = 's32[2]{0}', space=sflag, size = 0x8, scoped, tag = 'scoped memory for tpu_custom_call.1']
    #allocation4 [shape = 's32[2]{0}', space=sflag, size = 0x8, scoped, tag = 'scoped memory for tpu_custom_call.1']
    #allocation5 [shape = 'u8[393216]{0}', space=vmem, size = 0x60000, scoped, tag = 'input window, operand 2, single buffered']
    #allocation6 [shape = 's32[1]{0}', space=sflag, size = 0x4, scoped, tag = 'scoped memory for tpu_custom_call.1']
    #allocation7 [shape = 'u8[98304]{0}', space=vmem, size = 0x18000, scoped, tag = 'input window, operand 3, single buffered']
    #allocation8 [shape = 'u8[32768]{0}', space=vmem, size = 0x8000, scoped, tag = 'output window, operand 0']
    %10 = vsyncpa [#allocation3], 0
    %11 = vsyncpa [#allocation6], 0
    %12 = vsyncpa [#allocation4], 0
    %s13 = scalar_lea.sflag [#allocation4], 1
    %14 = vsyncpa %s13, 0
    loop: start=0, step=1, limit=4
    $region2: #{tpu_custom_call.1} parent=1 // loop_pre_header
      _
    $region3: #{tpu_custom_call.1} parent=1 // loop_header
      %s16 = sphi 0, %s20
      %p17 = scmp.ge.s32.totalorder %s16, 4
      %s26 = sphi 0, %s28
      %s29 = sphi 0, %s26
      %s30 = sphi 0, %s29
      %s46 = sphi 0, %s30
      %s50 = sphi 0, %s50
      %s52 = sphi 0, %s50
      %s53 = sphi 0, %s52
      %s67 = sphi 0, %s53
      %s71 = sphi 0, %s71
      %s73 = sphi 0, %s71
      %s74 = sphi 0, %s73
      %s88 = sphi 0, %s74
      %s92 = sphi 0, %s92
      %s94 = sphi 0, %s92
      %s95 = sphi 0, %s94
      %s109 = sphi 0, %s95
      %s113 = sphi 0, %s113
      %s115 = sphi 0, %s113
      %s116 = sphi 0, %s115
      %s130 = sphi 0, %s116
      %s136 = sphi 0, %s138
      %s139 = sphi 0, %s136
      %s140 = sphi 0, %s139
      %s156 = sphi 0, %s140
    $region4: #{tpu_custom_call.1} parent=1 // loop_header_branch
      %19 = sbr.rel (%p17) target = $region8
    $region5: #{tpu_custom_call.1} parent=1 // loop_body
      %s21 = ssub.s32 %s16, 1
      %s22 = ssub.s32 %s16, 2
      %s23 = sadd.s32 %s16, 1
      %s24 = ssub.s32 %s16, %s23
      %p25 = scmp.eq.s32.totalorder %s24, 0
      %s27 = sadd.s32 %s26, 1
      %s28 = scalar_select %p25, %s26, %s27
      %p31 = pneg %p25
      %p32 = scmp.eq.s32.totalorder %s16, 1
      %p33 = por %p31, %p32
      %p34 = scmp.ne.s32.totalorder %s26, %s29
      %p35 = scmp.eq.s32.totalorder %s16, 0
      %p36 = por %p34, %p35
      %p37 = scmp.ne.s32.totalorder %s26, %s29
      %p38 = scmp.eq.s32.totalorder %s21, 1
      %p39 = por %p37, %p38
      %p40 = scmp.ne.s32.totalorder %s29, %s30
      %p41 = scmp.eq.s32.totalorder %s21, 0
      %p42 = por %p40, %p41
      %p43 = scmp.ne.s32.totalorder %s29, %s30
      %p44 = scmp.eq.s32.totalorder %s22, 1
      %p45 = por %p43, %p44
      %p47 = scmp.ne.s32.totalorder %s30, %s46
      %p48 = scmp.eq.s32.totalorder %s22, 0
      %p49 = por %p47, %p48
      %s51 = sadd.s32 %s50, 1
      %p54 = scmp.eq.s32.totalorder %s16, 1
      %p55 = scmp.ne.s32.totalorder %s50, %s52
      %p56 = scmp.eq.s32.totalorder %s16, 0
      %p57 = por %p55, %p56
      %p58 = scmp.ne.s32.totalorder %s50, %s52
      %p59 = scmp.eq.s32.totalorder %s21, 1
      %p60 = por %p58, %p59
      %p61 = scmp.ne.s32.totalorder %s52, %s53
      %p62 = scmp.eq.s32.totalorder %s21, 0
      %p63 = por %p61, %p62
      %p64 = scmp.ne.s32.totalorder %s52, %s53
      %p65 = scmp.eq.s32.totalorder %s22, 1
      %p66 = por %p64, %p65
      %p68 = scmp.ne.s32.totalorder %s53, %s67
      %p69 = scmp.eq.s32.totalorder %s22, 0
      %p70 = por %p68, %p69
      %s72 = sadd.s32 %s71, 1
      %p75 = scmp.eq.s32.totalorder %s16, 1
      %p76 = scmp.ne.s32.totalorder %s71, %s73
      %p77 = scmp.eq.s32.totalorder %s16, 0
      %p78 = por %p76, %p77
      %p79 = scmp.ne.s32.totalorder %s71, %s73
      %p80 = scmp.eq.s32.totalorder %s21, 1
      %p81 = por %p79, %p80
      %p82 = scmp.ne.s32.totalorder %s73, %s74
      %p83 = scmp.eq.s32.totalorder %s21, 0
      %p84 = por %p82, %p83
      %p85 = scmp.ne.s32.totalorder %s73, %s74
      %p86 = scmp.eq.s32.totalorder %s22, 1
      %p87 = por %p85, %p86
      %p89 = scmp.ne.s32.totalorder %s74, %s88
      %p90 = scmp.eq.s32.totalorder %s22, 0
      %p91 = por %p89, %p90
      %s93 = sadd.s32 %s92, 1
      %p96 = scmp.eq.s32.totalorder %s16, 1
      %p97 = scmp.ne.s32.totalorder %s92, %s94
      %p98 = scmp.eq.s32.totalorder %s16, 0
      %p99 = por %p97, %p98
      %p100 = scmp.ne.s32.totalorder %s92, %s94
      %p101 = scmp.eq.s32.totalorder %s21, 1
      %p102 = por %p100, %p101
      %p103 = scmp.ne.s32.totalorder %s94, %s95
      %p104 = scmp.eq.s32.totalorder %s21, 0
      %p105 = por %p103, %p104
      %p106 = scmp.ne.s32.totalorder %s94, %s95
      %p107 = scmp.eq.s32.totalorder %s22, 1
      %p108 = por %p106, %p107
      %p110 = scmp.ne.s32.totalorder %s95, %s109
      %p111 = scmp.eq.s32.totalorder %s22, 0
      %p112 = por %p110, %p111
      %s114 = sadd.s32 %s113, 1
      %p117 = scmp.eq.s32.totalorder %s16, 1
      %p118 = scmp.ne.s32.totalorder %s113, %s115
      %p119 = scmp.eq.s32.totalorder %s16, 0
      %p120 = por %p118, %p119
      %p121 = scmp.ne.s32.totalorder %s113, %s115
      %p122 = scmp.eq.s32.totalorder %s21, 1
      %p123 = por %p121, %p122
      %p124 = scmp.ne.s32.totalorder %s115, %s116
      %p125 = scmp.eq.s32.totalorder %s21, 0
      %p126 = por %p124, %p125
      %p127 = scmp.ne.s32.totalorder %s115, %s116
      %p128 = scmp.eq.s32.totalorder %s22, 1
      %p129 = por %p127, %p128
      %p131 = scmp.ne.s32.totalorder %s116, %s130
      %p132 = scmp.eq.s32.totalorder %s22, 0
      %p133 = por %p131, %p132
      %s134 = ssub.s32 %s16, %s23
      %p135 = scmp.eq.s32.totalorder %s134, 0
      %s137 = sadd.s32 %s136, 1
      %s138 = scalar_select %p135, %s136, %s137
      %p141 = pneg %p135
      %p142 = scmp.eq.s32.totalorder %s16, 1
      %p143 = por %p141, %p142
      %p144 = scmp.ne.s32.totalorder %s136, %s139
      %p145 = scmp.eq.s32.totalorder %s16, 0
      %p146 = por %p144, %p145
      %p147 = scmp.ne.s32.totalorder %s136, %s139
      %p148 = scmp.eq.s32.totalorder %s21, 1
      %p149 = por %p147, %p148
      %p150 = scmp.ne.s32.totalorder %s139, %s140
      %p151 = scmp.eq.s32.totalorder %s21, 0
      %p152 = por %p150, %p151
      %p153 = scmp.ne.s32.totalorder %s139, %s140
      %p154 = scmp.eq.s32.totalorder %s22, 1
      %p155 = por %p153, %p154
      %p157 = scmp.ne.s32.totalorder %s140, %s156
      %p158 = scmp.eq.s32.totalorder %s22, 0
      %p159 = por %p157, %p158
      %p160 = scmp.le.s32.totalorder 1, %s16
      %p161 = scmp.lt.s32.totalorder %s16, 3
      %p162 = pnand %p160, %p161
      %p163 = pneg %p162
      // Predicated region
      $region9: #{tpu_custom_call.1} parent=5 // pred_check
        _
      $region10: #{tpu_custom_call.1} parent=5 // pred_check_branch
        %165 = sbr.rel (%p162) target = $region12
      $region11: #{tpu_custom_call.1} parent=5 // pred_region
        %s166 = ssub.s32 %s16, 1
        // Predicated region
        $region13: #{tpu_custom_call.1} parent=11 // pred_check
          %p167 = pneg %p63
        $region14: #{tpu_custom_call.1} parent=11 // pred_check_branch
          %169 = sbr.rel (%p167) target = $region16
        $region15: #{tpu_custom_call.1} parent=11 // pred_region
          %s171 = ssub.s32 1024, 1024
          %172 = vsyncadd [#allocation3], %s171
          %s173 = sshll.u32 [#allocation2], 4
          %s174 = int_to_ptr.vmem [resolvable:$true] %s173
          %179 = dma.hbm_to_vmem [thread:$0]  %s1, 1024, %s174, [#allocation3], 256, 256, 16
        $region16: #{tpu_custom_call.1} parent=11 // pred_fallthru
          _
        // Predicated region
        $region17: #{tpu_custom_call.1} parent=11 // pred_check
          %p180 = pneg %p84
        $region18: #{tpu_custom_call.1} parent=11 // pred_check_branch
          %182 = sbr.rel (%p180) target = $region20
        $region19: #{tpu_custom_call.1} parent=11 // pred_region
          %s184 = ssub.s32 12288, 12288
          %185 = vsyncadd [#allocation6], %s184
          %s186 = sshll.u32 [#allocation5], 4
          %s187 = int_to_ptr.vmem [resolvable:$true] %s186
          %192 = dma.hbm_to_vmem [thread:$0]  %s2, 12288, %s187, [#allocation6], 192, 192, 12
        $region20: #{tpu_custom_call.1} parent=11 // pred_fallthru
          _
        // Predicated region
        $region21: #{tpu_custom_call.1} parent=11 // pred_check
          %p193 = pneg %p105
        $region22: #{tpu_custom_call.1} parent=11 // pred_check_branch
          %195 = sbr.rel (%p193) target = $region24
        $region23: #{tpu_custom_call.1} parent=11 // pred_region
          %s197 = ssub.s32 3072, 3072
          %198 = vsyncadd [#allocation6], %s197
          %s199 = sshll.u32 [#allocation7], 4
          %s200 = int_to_ptr.vmem [resolvable:$true] %s199
          %205 = dma.hbm_to_vmem [thread:$0]  %s3, 3072, %s200, [#allocation6], 64, 64, 4
        $region24: #{tpu_custom_call.1} parent=11 // pred_fallthru
          _
        // Predicated region
        $region25: #{tpu_custom_call.1} parent=11 // pred_check
          %p206 = pneg %p126
        $region26: #{tpu_custom_call.1} parent=11 // pred_check_branch
          %208 = sbr.rel (%p206) target = $region28
        $region27: #{tpu_custom_call.1} parent=11 // pred_region
          _
        $region28: #{tpu_custom_call.1} parent=11 // pred_fallthru
          _
      $region12: #{tpu_custom_call.1} parent=5 // pred_fallthru
        _
      %p209 = scmp.lt.s32.totalorder %s16, 2
      // Predicated region
      $region29: #{tpu_custom_call.1} parent=5 // pred_check
        %p210 = pneg %p209
      $region30: #{tpu_custom_call.1} parent=5 // pred_check_branch
        %212 = sbr.rel (%p210) target = $region32
      $region31: #{tpu_custom_call.1} parent=5 // pred_region
        // Predicated region
        $region33: #{tpu_custom_call.1} parent=31 // pred_check
          %p213 = pneg %p36
        $region34: #{tpu_custom_call.1} parent=31 // pred_check_branch
          %215 = sbr.rel (%p213) target = $region36
        $region35: #{tpu_custom_call.1} parent=31 // pred_region
          %s216 = smul.u32 4, %s16
          %p217 = scmp.lt.s32.totalorder %s216, 7
          %s218 = scalar_select %p217, %s216, 7
          %s219 = smul.addr %s218, 4
          %s220 = scalar_lea.vmem %s0, %s219
          %s221 = smul.u32 4, %s16
        $region36: #{tpu_custom_call.1} parent=31 // pred_fallthru
          _
      $region32: #{tpu_custom_call.1} parent=5 // pred_fallthru
        _
      %p222 = scmp.le.s32.totalorder 1, %s16
      %p223 = scmp.lt.s32.totalorder %s16, 3
      %p224 = pnand %p222, %p223
      %p225 = pneg %p224
      // Predicated region
      $region37: #{tpu_custom_call.1} parent=5 // pred_check
        _
      $region38: #{tpu_custom_call.1} parent=5 // pred_check_branch
        %227 = sbr.rel (%p224) target = $region40
      $region39: #{tpu_custom_call.1} parent=5 // pred_region
        %s228 = ssub.s32 %s16, 1
        // Predicated region
        $region41: #{tpu_custom_call.1} parent=39 // pred_check
          %p229 = pneg %p63
        $region42: #{tpu_custom_call.1} parent=39 // pred_check_branch
          %231 = sbr.rel (%p229) target = $region44
        $region43: #{tpu_custom_call.1} parent=39 // pred_region
          %232 = dma.done [#allocation3], 1024
        $region44: #{tpu_custom_call.1} parent=39 // pred_fallthru
          _
        // Predicated region
        $region45: #{tpu_custom_call.1} parent=39 // pred_check
          %p233 = pneg %p84
        $region46: #{tpu_custom_call.1} parent=39 // pred_check_branch
          %235 = sbr.rel (%p233) target = $region48
        $region47: #{tpu_custom_call.1} parent=39 // pred_region
          %236 = dma.done [#allocation6], 12288
        $region48: #{tpu_custom_call.1} parent=39 // pred_fallthru
          _
        // Predicated region
        $region49: #{tpu_custom_call.1} parent=39 // pred_check
          %p237 = pneg %p105
        $region50: #{tpu_custom_call.1} parent=39 // pred_check_branch
          %239 = sbr.rel (%p237) target = $region52
        $region51: #{tpu_custom_call.1} parent=39 // pred_region
          %240 = dma.done [#allocation6], 3072
        $region52: #{tpu_custom_call.1} parent=39 // pred_fallthru
          _
        %s241 = smul.u32 4, %s21
        %p242 = scmp.lt.s32.totalorder %s241, 7
        %s243 = scalar_select %p242, %s241, 7
        %s244 = smul.addr %s243, 4
        %s245 = scalar_lea.vmem %s0, %s244
        %p246 = pneg %p42
        %p247 = pneg %p39
        %p248 = pneg %p63
        %p249 = pneg %p60
        %p250 = pneg %p84
        %p251 = pneg %p81
        %p252 = pneg %p105
        %p253 = pneg %p102
        %p254 = pneg %p126
        %p255 = pneg %p123
        %p256 = pneg %p152
        %p257 = pneg %p149
        %s258 = sand.u32 %s139, 1
        %s259 = scalar_lea.sflag [#allocation4], %s258
        %s260 = sand.u32 %s139, 1
        %s261 = smul.addr %s260, 32
        %s262 = scalar_lea.vmem [#allocation8], %s261
        %s263 = smul.u32 4, %s21
        %p264 = scmp.lt.s32.totalorder %s263, 7
        %s265 = scalar_select %p264, %s263, 7
        %s266 = smul.addr %s265, 4
        %s267 = scalar_lea.vmem %s0, %s266
        %s268 = smul.u32 4, %s21
        %s269 = smul.u32 4, %s21
        %v271 = vld [vmem:[%s4] ss:$8 sm:$0xf]
        %s272 = scalar_lea.vmem %s4, 1
        %v273 = vld [vmem:[%s272] ss:$8 sm:$0xf]
        %s274 = scalar_lea.vmem %s4, 2
        %v275 = vld [vmem:[%s274] ss:$8 sm:$0xf]
        %s276 = scalar_lea.vmem %s4, 3
        %v277 = vld [vmem:[%s276] ss:$8 sm:$0x7]
        %s278 = scalar_lea.vmem %s4, 4
        %v279 = vld [vmem:[%s278] ss:$8 sm:$0x7]
        %s280 = scalar_lea.vmem %s4, 5
        %v281 = vld [vmem:[%s280] ss:$8 sm:$0x7]
        %v282 = vld [vmem:[%s4 + $0x6] ss:$0 sm:$0xff]
        %v283 = vld [vmem:[%s267] sm:$0xf]
        %v284 = vld [vmem:[%s267 + $0x4] sm:$0xf]
        %v285 = vld [vmem:[%s267 + $0x8] sm:$0xf]
        %v286 = vld [vmem:[%s267 + $0xc] sm:$0xf]
        %v287 = vld [vmem:[#allocation2] sm:$0xff]
        %v288 = vld [vmem:[#allocation2 + $0x8] sm:$0xff]
        %v289 = vld [vmem:[#allocation2 + $0x10] sm:$0xff]
        %v290 = vld [vmem:[#allocation2 + $0x18] sm:$0xff]
        %v291 = vld [vmem:[#allocation2 + $0x20] sm:$0xff]
        %v292 = vld [vmem:[#allocation2 + $0x28] sm:$0xff]
        %v293 = vld [vmem:[#allocation2 + $0x30] sm:$0xff]
        %v294 = vld [vmem:[#allocation2 + $0x38] sm:$0xff]
        %v296 = vlaneseq
        %v297 = vshrl.u32 %v296, 7
        %v298 = vsub.s32 0, %v297
        %v299 = vrot.slane %v271, %v298
        %v300 = vlaneseq
        %v301 = vshrl.u32 %v300, 7
        %v302 = vsub.s32 1, %v301
        %v303 = vrot.slane %v271, %v302
        %v304 = vlaneseq
        %v305 = vshrl.u32 %v304, 7
        %v306 = vsub.s32 2, %v305
        %v307 = vrot.slane %v271, %v306
        %v308 = vlaneseq
        %v309 = vshrl.u32 %v308, 7
        %v310 = vsub.s32 3, %v309
        %v311 = vrot.slane %v271, %v310
        %v320 = vunpack.c.l.b16 %v283
        %v321 = vunpack.c.l.b16 %v284
        %v322 = vunpack.c.l.b16 %v285
        %v323 = vunpack.c.l.b16 %v286
        %v324 = vpack.c.b16 %v321, %v320
        %v325 = vpack.c.b16 %v323, %v322
        %v334 = vunpack.c.l.b16 %v287
        %v335 = vunpack.c.h.b16 %v287
        %v336 = vunpack.c.l.b16 %v288
        %v337 = vunpack.c.h.b16 %v288
        %v338 = vunpack.c.l.b16 %v289
        %v339 = vunpack.c.h.b16 %v289
        %v340 = vunpack.c.l.b16 %v290
        %v341 = vunpack.c.h.b16 %v290
        %v342 = vunpack.c.l.b16 %v291
        %v343 = vunpack.c.h.b16 %v291
        %v344 = vunpack.c.l.b16 %v292
        %v345 = vunpack.c.h.b16 %v292
        %v346 = vunpack.c.l.b16 %v293
        %v347 = vunpack.c.h.b16 %v293
        %v348 = vunpack.c.l.b16 %v294
        %v349 = vunpack.c.h.b16 %v294
        %v350 = vpack.c.b16 %v338, %v334
        %v351 = vpack.c.b16 %v339, %v335
        %v352 = vpack.c.b16 %v340, %v336
        %v353 = vpack.c.b16 %v341, %v337
        %v354 = vpack.c.b16 %v346, %v342
        %v355 = vpack.c.b16 %v347, %v343
        %v356 = vpack.c.b16 %v348, %v344
        %v357 = vpack.c.b16 %v349, %v345
        %vm366 = vcmask 261120
        %v368 = vsel %vm366, %v324, 0
        %v371 = vsel %vm366, %v325, 0
        %373 = vmatprep.subr.bf16.mxu0 %v351
        %374 = vmatpush1.bf16.msra.mxu0 %v350
        %375 = vmatprep.subr.bf16.mxu0 %v355
        %376 = vmatpush1.bf16.msra.mxu0 %v354
        %377 = vmatprep.subr.bf16.mxu0 0
        %378 = vmatpush1.bf16.msra.mxu0 0
        %379 = vmatprep.subr.bf16.mxu0 0
        %380 = vmatpush1.bf16.msra.mxu0 0
        %381 = vmatprep.subr.bf16.mxu0 0
        %382 = vmatpush1.bf16.msra.mxu0 0
        %383 = vmatprep.subr.bf16.mxu0 0
        %384 = vmatpush1.bf16.msra.mxu0 0
        %385 = vmatprep.subr.bf16.mxu0 0
        %386 = vmatpush1.bf16.msra.mxu0 0
        %387 = vmatprep.subr.bf16.mxu0 0
        %388 = vmatpush1.bf16.msra.mxu0 0
        %389 = vmatprep.subr.bf16.mxu0 0
        %390 = vmatpush1.bf16.msra.mxu0 0
        %391 = vmatprep.subr.bf16.mxu0 0
        %392 = vmatpush1.bf16.msra.mxu0 0
        %393 = vmatprep.subr.bf16.mxu0 0
        %394 = vmatpush1.bf16.msra.mxu0 0
        %395 = vmatprep.subr.bf16.mxu0 0
        %396 = vmatpush1.bf16.msra.mxu0 0
        %397 = vmatprep.subr.bf16.mxu0 0
        %398 = vmatpush1.bf16.msra.mxu0 0
        %399 = vmatprep.subr.bf16.mxu0 0
        %400 = vmatpush1.bf16.msra.mxu0 0
        %401 = vmatprep.subr.bf16.mxu0 0
        %402 = vmatpush1.bf16.msra.mxu0 0
        %403 = vmatprep.subr.bf16.mxu0 0
        %404 = vmatpush1.bf16.msra.mxu0 0
        %405 = vmatprep.mubr.bf16.mxu0 0
        %406 = vmatmul.mubr.bf16.gmra.mrb[0].mxu0 %v368
        %v407 = vpop.f32.mrb[0].mxu0
        %v408 = vadd.f32 %v299, %v407
        %v409 = vpop.f32.mrb[0].mxu0
        %v410 = vadd.f32 %v303, %v409
        %v411 = vpop.f32.mrb[0].mxu0
        %v412 = vadd.f32 %v299, %v411
        %v413 = vpop.f32.mrb[0].mxu0
        %v414 = vadd.f32 %v303, %v413
        %415 = vmatprep.mubr.bf16.mxu0 0
        %416 = vmatmul.mubr.bf16.gmra.mrb[0].mxu0 %v371
        %v417 = vpop.f32.mrb[0].mxu0
        %v418 = vadd.f32 %v299, %v417
        %v419 = vpop.f32.mrb[0].mxu0
        %v420 = vadd.f32 %v303, %v419
        %v421 = vpop.f32.mrb[0].mxu0
        %v422 = vadd.f32 %v299, %v421
        %v423 = vpop.f32.mrb[0].mxu0
        %v424 = vadd.f32 %v303, %v423
        %425 = vdwg.mxu0
        %426 = vmatprep.subr.bf16.mxu0 %v353
        %427 = vmatpush1.bf16.msra.mxu0 %v352
        %428 = vmatprep.subr.bf16.mxu0 %v357
        %429 = vmatpush1.bf16.msra.mxu0 %v356
        %430 = vmatprep.subr.bf16.mxu0 0
        %431 = vmatpush1.bf16.msra.mxu0 0
        %432 = vmatprep.subr.bf16.mxu0 0
        %433 = vmatpush1.bf16.msra.mxu0 0
        %434 = vmatprep.subr.bf16.mxu0 0
        %435 = vmatpush1.bf16.msra.mxu0 0
        %436 = vmatprep.subr.bf16.mxu0 0
        %437 = vmatpush1.bf16.msra.mxu0 0
        %438 = vmatprep.subr.bf16.mxu0 0
        %439 = vmatpush1.bf16.msra.mxu0 0
        %440 = vmatprep.subr.bf16.mxu0 0
        %441 = vmatpush1.bf16.msra.mxu0 0
        %442 = vmatprep.subr.bf16.mxu0 0
        %443 = vmatpush1.bf16.msra.mxu0 0
        %444 = vmatprep.subr.bf16.mxu0 0
        %445 = vmatpush1.bf16.msra.mxu0 0
        %446 = vmatprep.subr.bf16.mxu0 0
        %447 = vmatpush1.bf16.msra.mxu0 0
        %448 = vmatprep.subr.bf16.mxu0 0
        %449 = vmatpush1.bf16.msra.mxu0 0
        %450 = vmatprep.subr.bf16.mxu0 0
        %451 = vmatpush1.bf16.msra.mxu0 0
        %452 = vmatprep.subr.bf16.mxu0 0
        %453 = vmatpush1.bf16.msra.mxu0 0
        %454 = vmatprep.subr.bf16.mxu0 0
        %455 = vmatpush1.bf16.msra.mxu0 0
        %456 = vmatprep.subr.bf16.mxu0 0
        %457 = vmatpush1.bf16.msra.mxu0 0
        %458 = vmatprep.mubr.bf16.mxu0 0
        %459 = vmatmul.mubr.bf16.gmra.mrb[0].mxu0 %v368
        %v460 = vpop.f32.mrb[0].mxu0
        %v461 = vadd.f32 %v307, %v460
        %v462 = vpop.f32.mrb[0].mxu0
        %v463 = vadd.f32 %v311, %v462
        %v464 = vpop.f32.mrb[0].mxu0
        %v465 = vadd.f32 %v307, %v464
        %v466 = vpop.f32.mrb[0].mxu0
        %v467 = vadd.f32 %v311, %v466
        %468 = vmatprep.mubr.bf16.mxu0 0
        %469 = vmatmul.mubr.bf16.gmra.mrb[0].mxu0 %v371
        %v470 = vpop.f32.mrb[0].mxu0
        %v471 = vadd.f32 %v307, %v470
        %v472 = vpop.f32.mrb[0].mxu0
        %v473 = vadd.f32 %v311, %v472
        %v474 = vpop.f32.mrb[0].mxu0
        %v475 = vadd.f32 %v307, %v474
        %v476 = vpop.f32.mrb[0].mxu0
        %v477 = vadd.f32 %v311, %v476
        %478 = vdwg.mxu0
        %v479 = vadd.f32 %v408, %v410
        %v480 = vadd.f32 %v479, %v461
        %v481 = vadd.f32 %v480, %v463
        %482 = vadd.xlane.f32.xlu0 %v481
        %v483 = vpop.xlane.xlu0 %482
        %v484 = vadd.f32 %v412, %v414
        %v485 = vadd.f32 %v484, %v465
        %v486 = vadd.f32 %v485, %v467
        %487 = vadd.xlane.f32.xlu0 %v486
        %v488 = vpop.xlane.xlu0 %487
        %v489 = vadd.f32 %v418, %v420
        %v490 = vadd.f32 %v489, %v471
        %v491 = vadd.f32 %v490, %v473
        %492 = vadd.xlane.f32.xlu0 %v491
        %v493 = vpop.xlane.xlu0 %492
        %v494 = vadd.f32 %v422, %v424
        %v495 = vadd.f32 %v494, %v475
        %v496 = vadd.f32 %v495, %v477
        %497 = vadd.xlane.f32.xlu0 %v496
        %v498 = vpop.xlane.xlu0 %497
        %v499 = vmul.f32 %v408, %v408
        %v500 = vmul.f32 %v410, %v410
        %v501 = vmul.f32 %v461, %v461
        %v502 = vmul.f32 %v463, %v463
        %v503 = vmul.f32 %v412, %v412
        %v504 = vmul.f32 %v414, %v414
        %v505 = vmul.f32 %v465, %v465
        %v506 = vmul.f32 %v467, %v467
        %v507 = vmul.f32 %v418, %v418
        %v508 = vmul.f32 %v420, %v420
        %v509 = vmul.f32 %v471, %v471
        %v510 = vmul.f32 %v473, %v473
        %v511 = vmul.f32 %v422, %v422
        %v512 = vmul.f32 %v424, %v424
        %v513 = vmul.f32 %v475, %v475
        %v514 = vmul.f32 %v477, %v477
        %v515 = vadd.f32 %v499, %v500
        %v516 = vadd.f32 %v515, %v501
        %v517 = vadd.f32 %v516, %v502
        %518 = vadd.xlane.f32.xlu0 %v517
        %v519 = vpop.xlane.xlu0 %518
        %v520 = vadd.f32 %v503, %v504
        %v521 = vadd.f32 %v520, %v505
        %v522 = vadd.f32 %v521, %v506
        %523 = vadd.xlane.f32.xlu0 %v522
        %v524 = vpop.xlane.xlu0 %523
        %v525 = vadd.f32 %v507, %v508
        %v526 = vadd.f32 %v525, %v509
        %v527 = vadd.f32 %v526, %v510
        %528 = vadd.xlane.f32.xlu0 %v527
        %v529 = vpop.xlane.xlu0 %528
        %v530 = vadd.f32 %v511, %v512
        %v531 = vadd.f32 %v530, %v513
        %v532 = vadd.f32 %v531, %v514
        %533 = vadd.xlane.f32.xlu0 %v532
        %v534 = vpop.xlane.xlu0 %533
        %v535 = vmul.f32 %v483, 0.0025
        %v536 = vmul.f32 %v488, 0.0025
        %v537 = vmul.f32 %v493, 0.0025
        %v538 = vmul.f32 %v498, 0.0025
        %v539 = vmul.f32 %v519, 0.0025
        %v540 = vmul.f32 %v524, 0.0025
        %v541 = vmul.f32 %v529, 0.0025
        %v542 = vmul.f32 %v534, 0.0025
        %v543 = vmul.f32 %v535, %v535
        %v544 = vmul.f32 %v536, %v536
        %v545 = vmul.f32 %v537, %v537
        %v546 = vmul.f32 %v538, %v538
        %v547 = vsub.f32 %v539, %v543
        %v548 = vsub.f32 %v540, %v544
        %v549 = vsub.f32 %v541, %v545
        %v550 = vsub.f32 %v542, %v546
        %v551 = vmax.f32 %v547, 0.0
        %v552 = vmax.f32 %v548, 0.0
        %v553 = vmax.f32 %v549, 0.0
        %v554 = vmax.f32 %v550, 0.0
        %v555 = vsub.f32 %v408, %v535
        %v556 = vsub.f32 %v410, %v535
        %v557 = vsub.f32 %v461, %v535
        %v558 = vsub.f32 %v463, %v535
        %v559 = vsub.f32 %v412, %v536
        %v560 = vsub.f32 %v414, %v536
        %v561 = vsub.f32 %v465, %v536
        %v562 = vsub.f32 %v467, %v536
        %v563 = vsub.f32 %v418, %v537
        %v564 = vsub.f32 %v420, %v537
        %v565 = vsub.f32 %v471, %v537
        %v566 = vsub.f32 %v473, %v537
        %v567 = vsub.f32 %v422, %v538
        %v568 = vsub.f32 %v424, %v538
        %v569 = vsub.f32 %v475, %v538
        %v570 = vsub.f32 %v477, %v538
        %v571 = vadd.f32 %v551, 1e-05
        %v572 = vadd.f32 %v552, 1e-05
        %v573 = vadd.f32 %v553, 1e-05
        %v574 = vadd.f32 %v554, 1e-05
        %v575 = vrsqrt.pop %v571
        %v576 = vrsqrt.pop %v572
        %v577 = vrsqrt.pop %v573
        %v578 = vrsqrt.pop %v574
        %v579 = vmul.f32 %v555, %v575
        %v580 = vmul.f32 %v556, %v575
        %v581 = vmul.f32 %v557, %v575
        %v582 = vmul.f32 %v558, %v575
        %v583 = vmul.f32 %v559, %v576
        %v584 = vmul.f32 %v560, %v576
        %v585 = vmul.f32 %v561, %v576
        %v586 = vmul.f32 %v562, %v576
        %v587 = vmul.f32 %v563, %v577
        %v588 = vmul.f32 %v564, %v577
        %v589 = vmul.f32 %v565, %v577
        %v590 = vmul.f32 %v566, %v577
        %v591 = vmul.f32 %v567, %v578
        %v592 = vmul.f32 %v568, %v578
        %v593 = vmul.f32 %v569, %v578
        %v594 = vmul.f32 %v570, %v578
        %v596 = vlaneseq
        %v597 = vshrl.u32 %v596, 7
        %v598 = vsub.s32 0, %v597
        %v599 = vrot.slane %v273, %v598
        %v600 = vlaneseq
        %v601 = vshrl.u32 %v600, 7
        %v602 = vsub.s32 1, %v601
        %v603 = vrot.slane %v273, %v602
        %v604 = vlaneseq
        %v605 = vshrl.u32 %v604, 7
        %v606 = vsub.s32 2, %v605
        %v607 = vrot.slane %v273, %v606
        %v608 = vlaneseq
        %v609 = vshrl.u32 %v608, 7
        %v610 = vsub.s32 3, %v609
        %v611 = vrot.slane %v273, %v610
        %v616 = vmul.f32 %v579, %v599
        %v617 = vmul.f32 %v580, %v603
        %v618 = vmul.f32 %v581, %v607
        %v619 = vmul.f32 %v582, %v611
        %v620 = vmul.f32 %v583, %v599
        %v621 = vmul.f32 %v584, %v603
        %v622 = vmul.f32 %v585, %v607
        %v623 = vmul.f32 %v586, %v611
        %v624 = vmul.f32 %v587, %v599
        %v625 = vmul.f32 %v588, %v603
        %v626 = vmul.f32 %v589, %v607
        %v627 = vmul.f32 %v590, %v611
        %v628 = vmul.f32 %v591, %v599
        %v629 = vmul.f32 %v592, %v603
        %v630 = vmul.f32 %v593, %v607
        %v631 = vmul.f32 %v594, %v611
        %v633 = vlaneseq
        %v634 = vshrl.u32 %v633, 7
        %v635 = vsub.s32 0, %v634
        %v636 = vrot.slane %v275, %v635
        %v637 = vlaneseq
        %v638 = vshrl.u32 %v637, 7
        %v639 = vsub.s32 1, %v638
        %v640 = vrot.slane %v275, %v639
        %v641 = vlaneseq
        %v642 = vshrl.u32 %v641, 7
        %v643 = vsub.s32 2, %v642
        %v644 = vrot.slane %v275, %v643
        %v645 = vlaneseq
        %v646 = vshrl.u32 %v645, 7
        %v647 = vsub.s32 3, %v646
        %v648 = vrot.slane %v275, %v647
        %v653 = vadd.f32 %v616, %v636
        %v654 = vadd.f32 %v617, %v640
        %v655 = vadd.f32 %v618, %v644
        %v656 = vadd.f32 %v619, %v648
        %v657 = vadd.f32 %v620, %v636
        %v658 = vadd.f32 %v621, %v640
        %v659 = vadd.f32 %v622, %v644
        %v660 = vadd.f32 %v623, %v648
        %v661 = vadd.f32 %v624, %v636
        %v662 = vadd.f32 %v625, %v640
        %v663 = vadd.f32 %v626, %v644
        %v664 = vadd.f32 %v627, %v648
        %v665 = vadd.f32 %v628, %v636
        %v666 = vadd.f32 %v629, %v640
        %v667 = vadd.f32 %v630, %v644
        %v668 = vadd.f32 %v631, %v648
        %v669 = vmax.f32 %v653, 0.0
        %v670 = vmax.f32 %v654, 0.0
        %v671 = vmax.f32 %v655, 0.0
        %v672 = vmax.f32 %v656, 0.0
        %v673 = vmax.f32 %v657, 0.0
        %v674 = vmax.f32 %v658, 0.0
        %v675 = vmax.f32 %v659, 0.0
        %v676 = vmax.f32 %v660, 0.0
        %v677 = vmax.f32 %v661, 0.0
        %v678 = vmax.f32 %v662, 0.0
        %v679 = vmax.f32 %v663, 0.0
        %v680 = vmax.f32 %v664, 0.0
        %v681 = vmax.f32 %v665, 0.0
        %v682 = vmax.f32 %v666, 0.0
        %v683 = vmax.f32 %v667, 0.0
        %v684 = vmax.f32 %v668, 0.0
        %v685 = vpack.c.bf16 %v673, %v669
        %v686 = vpack.c.bf16 %v674, %v670
        %v687 = vpack.c.bf16 %v675, %v671
        %v688 = vpack.c.bf16 %v676, %v672
        %v689 = vpack.c.bf16 %v681, %v677
        %v690 = vpack.c.bf16 %v682, %v678
        %v691 = vpack.c.bf16 %v683, %v679
        %v692 = vpack.c.bf16 %v684, %v680
        %v693 = vld [vmem:[#allocation5] sm:$0xff]
        %v694 = vld [vmem:[#allocation5 + $0x8] sm:$0xf]
        %v695 = vld [vmem:[#allocation5 + $0xc] sm:$0xff]
        %v696 = vld [vmem:[#allocation5 + $0x14] sm:$0xf]
        %v697 = vld [vmem:[#allocation5 + $0x18] sm:$0xff]
        %v698 = vld [vmem:[#allocation5 + $0x20] sm:$0xf]
        %v699 = vld [vmem:[#allocation5 + $0x24] sm:$0xff]
        %v700 = vld [vmem:[#allocation5 + $0x2c] sm:$0xf]
        %v701 = vld [vmem:[#allocation5 + $0x30] sm:$0xff]
        %v702 = vld [vmem:[#allocation5 + $0x38] sm:$0xf]
        %v703 = vld [vmem:[#allocation5 + $0x3c] sm:$0xff]
        %v704 = vld [vmem:[#allocation5 + $0x44] sm:$0xf]
        %v705 = vld [vmem:[#allocation5 + $0x48] sm:$0xff]
        %v706 = vld [vmem:[#allocation5 + $0x50] sm:$0xf]
        %v707 = vld [vmem:[#allocation5 + $0x54] sm:$0xff]
        %v708 = vld [vmem:[#allocation5 + $0x5c] sm:$0xf]
        %v709 = vld [vmem:[#allocation5 + $0x60] sm:$0xff]
        %v710 = vld [vmem:[#allocation5 + $0x68] sm:$0xf]
        %v711 = vld [vmem:[#allocation5 + $0x6c] sm:$0xff]
        %v712 = vld [vmem:[#allocation5 + $0x74] sm:$0xf]
        %v713 = vld [vmem:[#allocation5 + $0x78] sm:$0xff]
        %v714 = vld [vmem:[#allocation5 + $0x80] sm:$0xf]
        %v715 = vld [vmem:[#allocation5 + $0x84] sm:$0xff]
        %v716 = vld [vmem:[#allocation5 + $0x8c] sm:$0xf]
        %v717 = vld [vmem:[#allocation5 + $0x90] sm:$0xff]
        %v718 = vld [vmem:[#allocation5 + $0x98] sm:$0xf]
        %v719 = vld [vmem:[#allocation5 + $0x9c] sm:$0xff]
        %v720 = vld [vmem:[#allocation5 + $0xa4] sm:$0xf]
        %v721 = vld [vmem:[#allocation5 + $0xa8] sm:$0xff]
        %v722 = vld [vmem:[#allocation5 + $0xb0] sm:$0xf]
        %v723 = vld [vmem:[#allocation5 + $0xb4] sm:$0xff]
        %v724 = vld [vmem:[#allocation5 + $0xbc] sm:$0xf]
        %v725 = vld [vmem:[#allocation5 + $0xc0] sm:$0xff]
        %v726 = vld [vmem:[#allocation5 + $0xc8] sm:$0xf]
        %v727 = vld [vmem:[#allocation5 + $0xcc] sm:$0xff]
        %v728 = vld [vmem:[#allocation5 + $0xd4] sm:$0xf]
        %v729 = vld [vmem:[#allocation5 + $0xd8] sm:$0xff]
        %v730 = vld [vmem:[#allocation5 + $0xe0] sm:$0xf]
        %v731 = vld [vmem:[#allocation5 + $0xe4] sm:$0xff]
        %v732 = vld [vmem:[#allocation5 + $0xec] sm:$0xf]
        %v733 = vld [vmem:[#allocation5 + $0xf0] sm:$0xff]
        %v734 = vld [vmem:[#allocation5 + $0xf8] sm:$0xf]
        %v735 = vld [vmem:[#allocation5 + $0xfc] sm:$0xff]
        %v736 = vld [vmem:[#allocation5 + $0x104] sm:$0xf]
        %v737 = vld [vmem:[#allocation5 + $0x108] sm:$0xff]
        %v738 = vld [vmem:[#allocation5 + $0x110] sm:$0xf]
        %v739 = vld [vmem:[#allocation5 + $0x114] sm:$0xff]
        %v740 = vld [vmem:[#allocation5 + $0x11c] sm:$0xf]
        %v741 = vld [vmem:[#allocation5 + $0x120] sm:$0xff]
        %v742 = vld [vmem:[#allocation5 + $0x128] sm:$0xf]
        %v743 = vld [vmem:[#allocation5 + $0x12c] sm:$0xff]
        %v744 = vld [vmem:[#allocation5 + $0x134] sm:$0xf]
        %v745 = vld [vmem:[#allocation5 + $0x138] sm:$0xff]
        %v746 = vld [vmem:[#allocation5 + $0x140] sm:$0xf]
        %v747 = vld [vmem:[#allocation5 + $0x144] sm:$0xff]
        %v748 = vld [vmem:[#allocation5 + $0x14c] sm:$0xf]
        %v749 = vld [vmem:[#allocation5 + $0x150] sm:$0xff]
        %v750 = vld [vmem:[#allocation5 + $0x158] sm:$0xf]
        %v751 = vld [vmem:[#allocation5 + $0x15c] sm:$0xff]
        %v752 = vld [vmem:[#allocation5 + $0x164] sm:$0xf]
        %v753 = vld [vmem:[#allocation5 + $0x168] sm:$0xff]
        %v754 = vld [vmem:[#allocation5 + $0x170] sm:$0xf]
        %v755 = vld [vmem:[#allocation5 + $0x174] sm:$0xff]
        %v756 = vld [vmem:[#allocation5 + $0x17c] sm:$0xf]
        %v757 = vld [vmem:[#allocation5 + $0x180] sm:$0xff]
        %v758 = vld [vmem:[#allocation5 + $0x188] sm:$0xf]
        %v759 = vld [vmem:[#allocation5 + $0x18c] sm:$0xff]
        %v760 = vld [vmem:[#allocation5 + $0x194] sm:$0xf]
        %v761 = vld [vmem:[#allocation5 + $0x198] sm:$0xff]
        %v762 = vld [vmem:[#allocation5 + $0x1a0] sm:$0xf]
        %v763 = vld [vmem:[#allocation5 + $0x1a4] sm:$0xff]
        %v764 = vld [vmem:[#allocation5 + $0x1ac] sm:$0xf]
        %v765 = vld [vmem:[#allocation5 + $0x1b0] sm:$0xff]
        %v766 = vld [vmem:[#allocation5 + $0x1b8] sm:$0xf]
        %v767 = vld [vmem:[#allocation5 + $0x1bc] sm:$0xff]
        %v768 = vld [vmem:[#allocation5 + $0x1c4] sm:$0xf]
        %v769 = vld [vmem:[#allocation5 + $0x1c8] sm:$0xff]
        %v770 = vld [vmem:[#allocation5 + $0x1d0] sm:$0xf]
        %v771 = vld [vmem:[#allocation5 + $0x1d4] sm:$0xff]
        %v772 = vld [vmem:[#allocation5 + $0x1dc] sm:$0xf]
        %v773 = vld [vmem:[#allocation5 + $0x1e0] sm:$0xff]
        %v774 = vld [vmem:[#allocation5 + $0x1e8] sm:$0xf]
        %v775 = vld [vmem:[#allocation5 + $0x1ec] sm:$0xff]
        %v776 = vld [vmem:[#allocation5 + $0x1f4] sm:$0xf]
        %v777 = vld [vmem:[#allocation5 + $0x1f8] sm:$0xff]
        %v778 = vld [vmem:[#allocation5 + $0x200] sm:$0xf]
        %v779 = vld [vmem:[#allocation5 + $0x204] sm:$0xff]
        %v780 = vld [vmem:[#allocation5 + $0x20c] sm:$0xf]
        %v781 = vld [vmem:[#allocation5 + $0x210] sm:$0xff]
        %v782 = vld [vmem:[#allocation5 + $0x218] sm:$0xf]
        %v783 = vld [vmem:[#allocation5 + $0x21c] sm:$0xff]
        %v784 = vld [vmem:[#allocation5 + $0x224] sm:$0xf]
        %v785 = vld [vmem:[#allocation5 + $0x228] sm:$0xff]
        %v786 = vld [vmem:[#allocation5 + $0x230] sm:$0xf]
        %v787 = vld [vmem:[#allocation5 + $0x234] sm:$0xff]
        %v788 = vld [vmem:[#allocation5 + $0x23c] sm:$0xf]
        %v789 = vld [vmem:[#allocation5 + $0x240] sm:$0xff]
        %v790 = vld [vmem:[#allocation5 + $0x248] sm:$0xf]
        %v791 = vld [vmem:[#allocation5 + $0x24c] sm:$0xff]
        %v792 = vld [vmem:[#allocation5 + $0x254] sm:$0xf]
        %v793 = vld [vmem:[#allocation5 + $0x258] sm:$0xff]
        %v794 = vld [vmem:[#allocation5 + $0x260] sm:$0xf]
        %v795 = vld [vmem:[#allocation5 + $0x264] sm:$0xff]
        %v796 = vld [vmem:[#allocation5 + $0x26c] sm:$0xf]
        %v797 = vld [vmem:[#allocation5 + $0x270] sm:$0xff]
        %v798 = vld [vmem:[#allocation5 + $0x278] sm:$0xf]
        %v799 = vld [vmem:[#allocation5 + $0x27c] sm:$0xff]
        %v800 = vld [vmem:[#allocation5 + $0x284] sm:$0xf]
        %v801 = vld [vmem:[#allocation5 + $0x288] sm:$0xff]
        %v802 = vld [vmem:[#allocation5 + $0x290] sm:$0xf]
        %v803 = vld [vmem:[#allocation5 + $0x294] sm:$0xff]
        %v804 = vld [vmem:[#allocation5 + $0x29c] sm:$0xf]
        %v805 = vld [vmem:[#allocation5 + $0x2a0] sm:$0xff]
        %v806 = vld [vmem:[#allocation5 + $0x2a8] sm:$0xf]
        %v807 = vld [vmem:[#allocation5 + $0x2ac] sm:$0xff]
        %v808 = vld [vmem:[#allocation5 + $0x2b4] sm:$0xf]
        %v809 = vld [vmem:[#allocation5 + $0x2b8] sm:$0xff]
        %v810 = vld [vmem:[#allocation5 + $0x2c0] sm:$0xf]
        %v811 = vld [vmem:[#allocation5 + $0x2c4] sm:$0xff]
        %v812 = vld [vmem:[#allocation5 + $0x2cc] sm:$0xf]
        %v813 = vld [vmem:[#allocation5 + $0x2d0] sm:$0xff]
        %v814 = vld [vmem:[#allocation5 + $0x2d8] sm:$0xf]
        %v815 = vld [vmem:[#allocation5 + $0x2dc] sm:$0xff]
        %v816 = vld [vmem:[#allocation5 + $0x2e4] sm:$0xf]
        %v817 = vld [vmem:[#allocation5 + $0x2e8] sm:$0xff]
        %v818 = vld [vmem:[#allocation5 + $0x2f0] sm:$0xf]
        %v819 = vld [vmem:[#allocation5 + $0x2f4] sm:$0xff]
        %v820 = vld [vmem:[#allocation5 + $0x2fc] sm:$0xf]
        %v822 = vlaneseq
        %v823 = vshrl.u32 %v822, 7
        %v824 = vsub.s32 0, %v823
        %v825 = vrot.slane %v277, %v824
        %v826 = vlaneseq
        %v827 = vshrl.u32 %v826, 7
        %v828 = vsub.s32 1, %v827
        %v829 = vrot.slane %v277, %v828
        %v830 = vlaneseq
        %v831 = vshrl.u32 %v830, 7
        %v832 = vsub.s32 2, %v831
        %v833 = vrot.slane %v277, %v832
        %v965 = vunpack.c.l.b16 %v693
        %v966 = vunpack.c.h.b16 %v693
        %v967 = vunpack.c.l.b16 %v694
        %v968 = vunpack.c.l.b16 %v695
        %v969 = vunpack.c.h.b16 %v695
        %v970 = vunpack.c.l.b16 %v696
        %v971 = vunpack.c.l.b16 %v697
        %v972 = vunpack.c.h.b16 %v697
        %v973 = vunpack.c.l.b16 %v698
        %v974 = vunpack.c.l.b16 %v699
        %v975 = vunpack.c.h.b16 %v699
        %v976 = vunpack.c.l.b16 %v700
        %v977 = vunpack.c.l.b16 %v701
        %v978 = vunpack.c.h.b16 %v701
        %v979 = vunpack.c.l.b16 %v702
        %v980 = vunpack.c.l.b16 %v703
        %v981 = vunpack.c.h.b16 %v703
        %v982 = vunpack.c.l.b16 %v704
        %v983 = vunpack.c.l.b16 %v705
        %v984 = vunpack.c.h.b16 %v705
        %v985 = vunpack.c.l.b16 %v706
        %v986 = vunpack.c.l.b16 %v707
        %v987 = vunpack.c.h.b16 %v707
        %v988 = vunpack.c.l.b16 %v708
        %v989 = vunpack.c.l.b16 %v709
        %v990 = vunpack.c.h.b16 %v709
        %v991 = vunpack.c.l.b16 %v710
        %v992 = vunpack.c.l.b16 %v711
        %v993 = vunpack.c.h.b16 %v711
        %v994 = vunpack.c.l.b16 %v712
        %v995 = vunpack.c.l.b16 %v713
        %v996 = vunpack.c.h.b16 %v713
        %v997 = vunpack.c.l.b16 %v714
        %v998 = vunpack.c.l.b16 %v715
        %v999 = vunpack.c.h.b16 %v715
        %v1000 = vunpack.c.l.b16 %v716
        %v1001 = vunpack.c.l.b16 %v717
        %v1002 = vunpack.c.h.b16 %v717
        %v1003 = vunpack.c.l.b16 %v718
        %v1004 = vunpack.c.l.b16 %v719
        %v1005 = vunpack.c.h.b16 %v719
        %v1006 = vunpack.c.l.b16 %v720
        %v1007 = vunpack.c.l.b16 %v721
        %v1008 = vunpack.c.h.b16 %v721
        %v1009 = vunpack.c.l.b16 %v722
        %v1010 = vunpack.c.l.b16 %v723
        %v1011 = vunpack.c.h.b16 %v723
        %v1012 = vunpack.c.l.b16 %v724
        %v1013 = vunpack.c.l.b16 %v725
        %v1014 = vunpack.c.h.b16 %v725
        %v1015 = vunpack.c.l.b16 %v726
        %v1016 = vunpack.c.l.b16 %v727
        %v1017 = vunpack.c.h.b16 %v727
        %v1018 = vunpack.c.l.b16 %v728
        %v1019 = vunpack.c.l.b16 %v729
        %v1020 = vunpack.c.h.b16 %v729
        %v1021 = vunpack.c.l.b16 %v730
        %v1022 = vunpack.c.l.b16 %v731
        %v1023 = vunpack.c.h.b16 %v731
        %v1024 = vunpack.c.l.b16 %v732
        %v1025 = vunpack.c.l.b16 %v733
        %v1026 = vunpack.c.h.b16 %v733
        %v1027 = vunpack.c.l.b16 %v734
        %v1028 = vunpack.c.l.b16 %v735
        %v1029 = vunpack.c.h.b16 %v735
        %v1030 = vunpack.c.l.b16 %v736
        %v1031 = vunpack.c.l.b16 %v737
        %v1032 = vunpack.c.h.b16 %v737
        %v1033 = vunpack.c.l.b16 %v738
        %v1034 = vunpack.c.l.b16 %v739
        %v1035 = vunpack.c.h.b16 %v739
        %v1036 = vunpack.c.l.b16 %v740
        %v1037 = vunpack.c.l.b16 %v741
        %v1038 = vunpack.c.h.b16 %v741
        %v1039 = vunpack.c.l.b16 %v742
        %v1040 = vunpack.c.l.b16 %v743
        %v1041 = vunpack.c.h.b16 %v743
        %v1042 = vunpack.c.l.b16 %v744
        %v1043 = vunpack.c.l.b16 %v745
        %v1044 = vunpack.c.h.b16 %v745
        %v1045 = vunpack.c.l.b16 %v746
        %v1046 = vunpack.c.l.b16 %v747
        %v1047 = vunpack.c.h.b16 %v747
        %v1048 = vunpack.c.l.b16 %v748
        %v1049 = vunpack.c.l.b16 %v749
        %v1050 = vunpack.c.h.b16 %v749
        %v1051 = vunpack.c.l.b16 %v750
        %v1052 = vunpack.c.l.b16 %v751
        %v1053 = vunpack.c.h.b16 %v751
        %v1054 = vunpack.c.l.b16 %v752
        %v1055 = vunpack.c.l.b16 %v753
        %v1056 = vunpack.c.h.b16 %v753
        %v1057 = vunpack.c.l.b16 %v754
        %v1058 = vunpack.c.l.b16 %v755
        %v1059 = vunpack.c.h.b16 %v755
        %v1060 = vunpack.c.l.b16 %v756
        %v1061 = vunpack.c.l.b16 %v757
        %v1062 = vunpack.c.h.b16 %v757
        %v1063 = vunpack.c.l.b16 %v758
        %v1064 = vunpack.c.l.b16 %v759
        %v1065 = vunpack.c.h.b16 %v759
        %v1066 = vunpack.c.l.b16 %v760
        %v1067 = vunpack.c.l.b16 %v761
        %v1068 = vunpack.c.h.b16 %v761
        %v1069 = vunpack.c.l.b16 %v762
        %v1070 = vunpack.c.l.b16 %v763
        %v1071 = vunpack.c.h.b16 %v763
        %v1072 = vunpack.c.l.b16 %v764
        %v1073 = vunpack.c.l.b16 %v765
        %v1074 = vunpack.c.h.b16 %v765
        %v1075 = vunpack.c.l.b16 %v766
        %v1076 = vunpack.c.l.b16 %v767
        %v1077 = vunpack.c.h.b16 %v767
        %v1078 = vunpack.c.l.b16 %v768
        %v1079 = vunpack.c.l.b16 %v769
        %v1080 = vunpack.c.h.b16 %v769
        %v1081 = vunpack.c.l.b16 %v770
        %v1082 = vunpack.c.l.b16 %v771
        %v1083 = vunpack.c.h.b16 %v771
        %v1084 = vunpack.c.l.b16 %v772
        %v1085 = vunpack.c.l.b16 %v773
        %v1086 = vunpack.c.h.b16 %v773
        %v1087 = vunpack.c.l.b16 %v774
        %v1088 = vunpack.c.l.b16 %v775
        %v1089 = vunpack.c.h.b16 %v775
        %v1090 = vunpack.c.l.b16 %v776
        %v1091 = vunpack.c.l.b16 %v777
        %v1092 = vunpack.c.h.b16 %v777
        %v1093 = vunpack.c.l.b16 %v778
        %v1094 = vunpack.c.l.b16 %v779
        %v1095 = vunpack.c.h.b16 %v779
        %v1096 = vunpack.c.l.b16 %v780
        %v1097 = vunpack.c.l.b16 %v781
        %v1098 = vunpack.c.h.b16 %v781
        %v1099 = vunpack.c.l.b16 %v782
        %v1100 = vunpack.c.l.b16 %v783
        %v1101 = vunpack.c.h.b16 %v783
        %v1102 = vunpack.c.l.b16 %v784
        %v1103 = vunpack.c.l.b16 %v785
        %v1104 = vunpack.c.h.b16 %v785
        %v1105 = vunpack.c.l.b16 %v786
        %v1106 = vunpack.c.l.b16 %v787
        %v1107 = vunpack.c.h.b16 %v787
        %v1108 = vunpack.c.l.b16 %v788
        %v1109 = vunpack.c.l.b16 %v789
        %v1110 = vunpack.c.h.b16 %v789
        %v1111 = vunpack.c.l.b16 %v790
        %v1112 = vunpack.c.l.b16 %v791
        %v1113 = vunpack.c.h.b16 %v791
        %v1114 = vunpack.c.l.b16 %v792
        %v1115 = vunpack.c.l.b16 %v793
        %v1116 = vunpack.c.h.b16 %v793
        %v1117 = vunpack.c.l.b16 %v794
        %v1118 = vunpack.c.l.b16 %v795
        %v1119 = vunpack.c.h.b16 %v795
        %v1120 = vunpack.c.l.b16 %v796
        %v1121 = vunpack.c.l.b16 %v797
        %v1122 = vunpack.c.h.b16 %v797
        %v1123 = vunpack.c.l.b16 %v798
        %v1124 = vunpack.c.l.b16 %v799
        %v1125 = vunpack.c.h.b16 %v799
        %v1126 = vunpack.c.l.b16 %v800
        %v1127 = vunpack.c.l.b16 %v801
        %v1128 = vunpack.c.h.b16 %v801
        %v1129 = vunpack.c.l.b16 %v802
        %v1130 = vunpack.c.l.b16 %v803
        %v1131 = vunpack.c.h.b16 %v803
        %v1132 = vunpack.c.l.b16 %v804
        %v1133 = vunpack.c.l.b16 %v805
        %v1134 = vunpack.c.h.b16 %v805
        %v1135 = vunpack.c.l.b16 %v806
        %v1136 = vunpack.c.l.b16 %v807
        %v1137 = vunpack.c.h.b16 %v807
        %v1138 = vunpack.c.l.b16 %v808
        %v1139 = vunpack.c.l.b16 %v809
        %v1140 = vunpack.c.h.b16 %v809
        %v1141 = vunpack.c.l.b16 %v810
        %v1142 = vunpack.c.l.b16 %v811
        %v1143 = vunpack.c.h.b16 %v811
        %v1144 = vunpack.c.l.b16 %v812
        %v1145 = vunpack.c.l.b16 %v813
        %v1146 = vunpack.c.h.b16 %v813
        %v1147 = vunpack.c.l.b16 %v814
        %v1148 = vunpack.c.l.b16 %v815
        %v1149 = vunpack.c.h.b16 %v815
        %v1150 = vunpack.c.l.b16 %v816
        %v1151 = vunpack.c.l.b16 %v817
        %v1152 = vunpack.c.h.b16 %v817
        %v1153 = vunpack.c.l.b16 %v818
        %v1154 = vunpack.c.l.b16 %v819
        %v1155 = vunpack.c.h.b16 %v819
        %v1156 = vunpack.c.l.b16 %v820
        %v1157 = vpack.c.b16 %v968, %v965
        %v1158 = vpack.c.b16 %v969, %v966
        %v1159 = vpack.c.b16 %v970, %v967
        %v1160 = vpack.c.b16 %v974, %v971
        %v1161 = vpack.c.b16 %v975, %v972
        %v1162 = vpack.c.b16 %v976, %v973
        %v1163 = vpack.c.b16 %v980, %v977
        %v1164 = vpack.c.b16 %v981, %v978
        %v1165 = vpack.c.b16 %v982, %v979
        %v1166 = vpack.c.b16 %v986, %v983
        %v1167 = vpack.c.b16 %v987, %v984
        %v1168 = vpack.c.b16 %v988, %v985
        %v1169 = vpack.c.b16 %v992, %v989
        %v1170 = vpack.c.b16 %v993, %v990
        %v1171 = vpack.c.b16 %v994, %v991
        %v1172 = vpack.c.b16 %v998, %v995
        %v1173 = vpack.c.b16 %v999, %v996
        %v1174 = vpack.c.b16 %v1000, %v997
        %v1175 = vpack.c.b16 %v1004, %v1001
        %v1176 = vpack.c.b16 %v1005, %v1002
        %v1177 = vpack.c.b16 %v1006, %v1003
        %v1178 = vpack.c.b16 %v1010, %v1007
        %v1179 = vpack.c.b16 %v1011, %v1008
        %v1180 = vpack.c.b16 %v1012, %v1009
        %v1181 = vpack.c.b16 %v1016, %v1013
        %v1182 = vpack.c.b16 %v1017, %v1014
        %v1183 = vpack.c.b16 %v1018, %v1015
        %v1184 = vpack.c.b16 %v1022, %v1019
        %v1185 = vpack.c.b16 %v1023, %v1020
        %v1186 = vpack.c.b16 %v1024, %v1021
        %v1187 = vpack.c.b16 %v1028, %v1025
        %v1188 = vpack.c.b16 %v1029, %v1026
        %v1189 = vpack.c.b16 %v1030, %v1027
        %v1190 = vpack.c.b16 %v1034, %v1031
        %v1191 = vpack.c.b16 %v1035, %v1032
        %v1192 = vpack.c.b16 %v1036, %v1033
        %v1193 = vpack.c.b16 %v1040, %v1037
        %v1194 = vpack.c.b16 %v1041, %v1038
        %v1195 = vpack.c.b16 %v1042, %v1039
        %v1196 = vpack.c.b16 %v1046, %v1043
        %v1197 = vpack.c.b16 %v1047, %v1044
        %v1198 = vpack.c.b16 %v1048, %v1045
        %v1199 = vpack.c.b16 %v1052, %v1049
        %v1200 = vpack.c.b16 %v1053, %v1050
        %v1201 = vpack.c.b16 %v1054, %v1051
        %v1202 = vpack.c.b16 %v1058, %v1055
        %v1203 = vpack.c.b16 %v1059, %v1056
        %v1204 = vpack.c.b16 %v1060, %v1057
        %v1205 = vpack.c.b16 %v1064, %v1061
        %v1206 = vpack.c.b16 %v1065, %v1062
        %v1207 = vpack.c.b16 %v1066, %v1063
        %v1208 = vpack.c.b16 %v1070, %v1067
        %v1209 = vpack.c.b16 %v1071, %v1068
        %v1210 = vpack.c.b16 %v1072, %v1069
        %v1211 = vpack.c.b16 %v1076, %v1073
        %v1212 = vpack.c.b16 %v1077, %v1074
        %v1213 = vpack.c.b16 %v1078, %v1075
        %v1214 = vpack.c.b16 %v1082, %v1079
        %v1215 = vpack.c.b16 %v1083, %v1080
        %v1216 = vpack.c.b16 %v1084, %v1081
        %v1217 = vpack.c.b16 %v1088, %v1085
        %v1218 = vpack.c.b16 %v1089, %v1086
        %v1219 = vpack.c.b16 %v1090, %v1087
        %v1220 = vpack.c.b16 %v1094, %v1091
        %v1221 = vpack.c.b16 %v1095, %v1092
        %v1222 = vpack.c.b16 %v1096, %v1093
        %v1223 = vpack.c.b16 %v1100, %v1097
        %v1224 = vpack.c.b16 %v1101, %v1098
        %v1225 = vpack.c.b16 %v1102, %v1099
        %v1226 = vpack.c.b16 %v1106, %v1103
        %v1227 = vpack.c.b16 %v1107, %v1104
        %v1228 = vpack.c.b16 %v1108, %v1105
        %v1229 = vpack.c.b16 %v1112, %v1109
        %v1230 = vpack.c.b16 %v1113, %v1110
        %v1231 = vpack.c.b16 %v1114, %v1111
        %v1232 = vpack.c.b16 %v1118, %v1115
        %v1233 = vpack.c.b16 %v1119, %v1116
        %v1234 = vpack.c.b16 %v1120, %v1117
        %v1235 = vpack.c.b16 %v1124, %v1121
        %v1236 = vpack.c.b16 %v1125, %v1122
        %v1237 = vpack.c.b16 %v1126, %v1123
        %v1238 = vpack.c.b16 %v1130, %v1127
        %v1239 = vpack.c.b16 %v1131, %v1128
        %v1240 = vpack.c.b16 %v1132, %v1129
        %v1241 = vpack.c.b16 %v1136, %v1133
        %v1242 = vpack.c.b16 %v1137, %v1134
        %v1243 = vpack.c.b16 %v1138, %v1135
        %v1244 = vpack.c.b16 %v1142, %v1139
        %v1245 = vpack.c.b16 %v1143, %v1140
        %v1246 = vpack.c.b16 %v1144, %v1141
        %v1247 = vpack.c.b16 %v1148, %v1145
        %v1248 = vpack.c.b16 %v1149, %v1146
        %v1249 = vpack.c.b16 %v1150, %v1147
        %v1250 = vpack.c.b16 %v1154, %v1151
        %v1251 = vpack.c.b16 %v1155, %v1152
        %v1252 = vpack.c.b16 %v1156, %v1153
        %1349 = vmatprep.subr.bf16.mxu0 %v1158
        %1350 = vmatpush1.bf16.msra.mxu0 %v1157
        %1351 = vmatprep.subr.bf16.mxu0 %v1161
        %1352 = vmatpush1.bf16.msra.mxu0 %v1160
        %1353 = vmatprep.subr.bf16.mxu0 %v1164
        %1354 = vmatpush1.bf16.msra.mxu0 %v1163
        %1355 = vmatprep.subr.bf16.mxu0 %v1167
        %1356 = vmatpush1.bf16.msra.mxu0 %v1166
        %1357 = vmatprep.subr.bf16.mxu0 %v1170
        %1358 = vmatpush1.bf16.msra.mxu0 %v1169
        %1359 = vmatprep.subr.bf16.mxu0 %v1173
        %1360 = vmatpush1.bf16.msra.mxu0 %v1172
        %1361 = vmatprep.subr.bf16.mxu0 %v1176
        %1362 = vmatpush1.bf16.msra.mxu0 %v1175
        %1363 = vmatprep.subr.bf16.mxu0 %v1179
        %1364 = vmatpush1.bf16.msra.mxu0 %v1178
        %1365 = vmatprep.subr.bf16.mxu0 %v1182
        %1366 = vmatpush1.bf16.msra.mxu0 %v1181
        %1367 = vmatprep.subr.bf16.mxu0 %v1185
        %1368 = vmatpush1.bf16.msra.mxu0 %v1184
        %1369 = vmatprep.subr.bf16.mxu0 %v1188
        %1370 = vmatpush1.bf16.msra.mxu0 %v1187
        %1371 = vmatprep.subr.bf16.mxu0 %v1191
        %1372 = vmatpush1.bf16.msra.mxu0 %v1190
        %1373 = vmatprep.subr.bf16.mxu0 %v1194
        %1374 = vmatpush1.bf16.msra.mxu0 %v1193
        %1375 = vmatprep.subr.bf16.mxu0 %v1197
        %1376 = vmatpush1.bf16.msra.mxu0 %v1196
        %1377 = vmatprep.subr.bf16.mxu0 %v1200
        %1378 = vmatpush1.bf16.msra.mxu0 %v1199
        %1379 = vmatprep.subr.bf16.mxu0 %v1203
        %1380 = vmatpush1.bf16.msra.mxu0 %v1202
        %1381 = vmatprep.mubr.bf16.mxu0 %v686
        %1382 = vmatmul.mubr.bf16.gmra.mrb[0].mxu0 %v685
        %v1383 = vpop.f32.mrb[0].mxu0
        %v1384 = vadd.f32 %v825, %v1383
        %v1385 = vpop.f32.mrb[0].mxu0
        %v1386 = vadd.f32 %v829, %v1385
        %v1387 = vpop.f32.mrb[0].mxu0
        %v1388 = vadd.f32 %v825, %v1387
        %v1389 = vpop.f32.mrb[0].mxu0
        %v1390 = vadd.f32 %v829, %v1389
        %1391 = vmatprep.mubr.bf16.mxu0 %v690
        %1392 = vmatmul.mubr.bf16.gmra.mrb[0].mxu0 %v689
        %v1393 = vpop.f32.mrb[0].mxu0
        %v1394 = vadd.f32 %v825, %v1393
        %v1395 = vpop.f32.mrb[0].mxu0
        %v1396 = vadd.f32 %v829, %v1395
        %v1397 = vpop.f32.mrb[0].mxu0
        %v1398 = vadd.f32 %v825, %v1397
        %v1399 = vpop.f32.mrb[0].mxu0
        %v1400 = vadd.f32 %v829, %v1399
        %1401 = vdwg.mxu0
        %1402 = vmatprep.subr.bf16.mxu0 %v1206
        %1403 = vmatpush1.bf16.msra.mxu0 %v1205
        %1404 = vmatprep.subr.bf16.mxu0 %v1209
        %1405 = vmatpush1.bf16.msra.mxu0 %v1208
        %1406 = vmatprep.subr.bf16.mxu0 %v1212
        %1407 = vmatpush1.bf16.msra.mxu0 %v1211
        %1408 = vmatprep.subr.bf16.mxu0 %v1215
        %1409 = vmatpush1.bf16.msra.mxu0 %v1214
        %1410 = vmatprep.subr.bf16.mxu0 %v1218
        %1411 = vmatpush1.bf16.msra.mxu0 %v1217
        %1412 = vmatprep.subr.bf16.mxu0 %v1221
        %1413 = vmatpush1.bf16.msra.mxu0 %v1220
        %1414 = vmatprep.subr.bf16.mxu0 %v1224
        %1415 = vmatpush1.bf16.msra.mxu0 %v1223
        %1416 = vmatprep.subr.bf16.mxu0 %v1227
        %1417 = vmatpush1.bf16.msra.mxu0 %v1226
        %1418 = vmatprep.subr.bf16.mxu0 %v1230
        %1419 = vmatpush1.bf16.msra.mxu0 %v1229
        %1420 = vmatprep.subr.bf16.mxu0 %v1233
        %1421 = vmatpush1.bf16.msra.mxu0 %v1232
        %1422 = vmatprep.subr.bf16.mxu0 %v1236
        %1423 = vmatpush1.bf16.msra.mxu0 %v1235
        %1424 = vmatprep.subr.bf16.mxu0 %v1239
        %1425 = vmatpush1.bf16.msra.mxu0 %v1238
        %1426 = vmatprep.subr.bf16.mxu0 %v1242
        %1427 = vmatpush1.bf16.msra.mxu0 %v1241
        %1428 = vmatprep.subr.bf16.mxu0 %v1245
        %1429 = vmatpush1.bf16.msra.mxu0 %v1244
        %1430 = vmatprep.subr.bf16.mxu0 %v1248
        %1431 = vmatpush1.bf16.msra.mxu0 %v1247
        %1432 = vmatprep.subr.bf16.mxu0 %v1251
        %1433 = vmatpush1.bf16.msra.mxu0 %v1250
        %1434 = vmatprep.mubr.bf16.mxu0 %v688
        %1435 = vmatmul.mubr.bf16.gmra.mrb[0].mxu0 %v687
        %v1436 = vpop.f32.mrb[0].mxu0
        %v1437 = vadd.f32 %v1384, %v1436
        %v1438 = vpop.f32.mrb[0].mxu0
        %v1439 = vadd.f32 %v1386, %v1438
        %v1440 = vpop.f32.mrb[0].mxu0
        %v1441 = vadd.f32 %v1388, %v1440
        %v1442 = vpop.f32.mrb[0].mxu0
        %v1443 = vadd.f32 %v1390, %v1442
        %1444 = vmatprep.mubr.bf16.mxu0 %v692
        %1445 = vmatmul.mubr.bf16.gmra.mrb[0].mxu0 %v691
        %v1446 = vpop.f32.mrb[0].mxu0
        %v1447 = vadd.f32 %v1394, %v1446
        %v1448 = vpop.f32.mrb[0].mxu0
        %v1449 = vadd.f32 %v1396, %v1448
        %v1450 = vpop.f32.mrb[0].mxu0
        %v1451 = vadd.f32 %v1398, %v1450
        %v1452 = vpop.f32.mrb[0].mxu0
        %v1453 = vadd.f32 %v1400, %v1452
        %1454 = vdwg.mxu0
        %1455 = vmatprep.subr.bf16.mxu0 0
        %1456 = vmatpush1.bf16.msra.mxu0 %v1159
        %1457 = vmatprep.subr.bf16.mxu0 0
        %1458 = vmatpush1.bf16.msra.mxu0 %v1162
        %1459 = vmatprep.subr.bf16.mxu0 0
        %1460 = vmatpush1.bf16.msra.mxu0 %v1165
        %1461 = vmatprep.subr.bf16.mxu0 0
        %1462 = vmatpush1.bf16.msra.mxu0 %v1168
        %1463 = vmatprep.subr.bf16.mxu0 0
        %1464 = vmatpush1.bf16.msra.mxu0 %v1171
        %1465 = vmatprep.subr.bf16.mxu0 0
        %1466 = vmatpush1.bf16.msra.mxu0 %v1174
        %1467 = vmatprep.subr.bf16.mxu0 0
        %1468 = vmatpush1.bf16.msra.mxu0 %v1177
        %1469 = vmatprep.subr.bf16.mxu0 0
        %1470 = vmatpush1.bf16.msra.mxu0 %v1180
        %1471 = vmatprep.subr.bf16.mxu0 0
        %1472 = vmatpush1.bf16.msra.mxu0 %v1183
        %1473 = vmatprep.subr.bf16.mxu0 0
        %1474 = vmatpush1.bf16.msra.mxu0 %v1186
        %1475 = vmatprep.subr.bf16.mxu0 0
        %1476 = vmatpush1.bf16.msra.mxu0 %v1189
        %1477 = vmatprep.subr.bf16.mxu0 0
        %1478 = vmatpush1.bf16.msra.mxu0 %v1192
        %1479 = vmatprep.subr.bf16.mxu0 0
        %1480 = vmatpush1.bf16.msra.mxu0 %v1195
        %1481 = vmatprep.subr.bf16.mxu0 0
        %1482 = vmatpush1.bf16.msra.mxu0 %v1198
        %1483 = vmatprep.subr.bf16.mxu0 0
        %1484 = vmatpush1.bf16.msra.mxu0 %v1201
        %1485 = vmatprep.subr.bf16.mxu0 0
        %1486 = vmatpush1.bf16.msra.mxu0 %v1204
        %1487 = vmatprep.mubr.bf16.mxu0 %v686
        %1488 = vmatmul.mubr.bf16.gmra.mrb[0].mxu0 %v685
        %v1489 = vpop.f32.mrb[0].mxu0
        %v1490 = vadd.f32 %v833, %v1489
        %v1491 = vpop.f32.mrb[0].mxu0
        %v1492 = vpop.f32.mrb[0].mxu0
        %v1493 = vadd.f32 %v833, %v1492
        %v1494 = vpop.f32.mrb[0].mxu0
        %1495 = vmatprep.mubr.bf16.mxu0 %v690
        %1496 = vmatmul.mubr.bf16.gmra.mrb[0].mxu0 %v689
        %v1497 = vpop.f32.mrb[0].mxu0
        %v1498 = vadd.f32 %v833, %v1497
        %v1499 = vpop.f32.mrb[0].mxu0
        %v1500 = vpop.f32.mrb[0].mxu0
        %v1501 = vadd.f32 %v833, %v1500
        %v1502 = vpop.f32.mrb[0].mxu0
        %1503 = vdwg.mxu0
        %1504 = vmatprep.subr.bf16.mxu0 0
        %1505 = vmatpush1.bf16.msra.mxu0 %v1207
        %1506 = vmatprep.subr.bf16.mxu0 0
        %1507 = vmatpush1.bf16.msra.mxu0 %v1210
        %1508 = vmatprep.subr.bf16.mxu0 0
        %1509 = vmatpush1.bf16.msra.mxu0 %v1213
        %1510 = vmatprep.subr.bf16.mxu0 0
        %1511 = vmatpush1.bf16.msra.mxu0 %v1216
        %1512 = vmatprep.subr.bf16.mxu0 0
        %1513 = vmatpush1.bf16.msra.mxu0 %v1219
        %1514 = vmatprep.subr.bf16.mxu0 0
        %1515 = vmatpush1.bf16.msra.mxu0 %v1222
        %1516 = vmatprep.subr.bf16.mxu0 0
        %1517 = vmatpush1.bf16.msra.mxu0 %v1225
        %1518 = vmatprep.subr.bf16.mxu0 0
        %1519 = vmatpush1.bf16.msra.mxu0 %v1228
        %1520 = vmatprep.subr.bf16.mxu0 0
        %1521 = vmatpush1.bf16.msra.mxu0 %v1231
        %1522 = vmatprep.subr.bf16.mxu0 0
        %1523 = vmatpush1.bf16.msra.mxu0 %v1234
        %1524 = vmatprep.subr.bf16.mxu0 0
        %1525 = vmatpush1.bf16.msra.mxu0 %v1237
        %1526 = vmatprep.subr.bf16.mxu0 0
        %1527 = vmatpush1.bf16.msra.mxu0 %v1240
        %1528 = vmatprep.subr.bf16.mxu0 0
        %1529 = vmatpush1.bf16.msra.mxu0 %v1243
        %1530 = vmatprep.subr.bf16.mxu0 0
        %1531 = vmatpush1.bf16.msra.mxu0 %v1246
        %1532 = vmatprep.subr.bf16.mxu0 0
        %1533 = vmatpush1.bf16.msra.mxu0 %v1249
        %1534 = vmatprep.subr.bf16.mxu0 0
        %1535 = vmatpush1.bf16.msra.mxu0 %v1252
        %1536 = vmatprep.mubr.bf16.mxu0 %v688
        %1537 = vmatmul.mubr.bf16.gmra.mrb[0].mxu0 %v687
        %v1538 = vpop.f32.mrb[0].mxu0
        %v1539 = vadd.f32 %v1490, %v1538
        %v1540 = vpop.f32.mrb[0].mxu0
        %v1541 = vpop.f32.mrb[0].mxu0
        %v1542 = vadd.f32 %v1493, %v1541
        %v1543 = vpop.f32.mrb[0].mxu0
        %1544 = vmatprep.mubr.bf16.mxu0 %v692
        %1545 = vmatmul.mubr.bf16.gmra.mrb[0].mxu0 %v691
        %v1546 = vpop.f32.mrb[0].mxu0
        %v1547 = vadd.f32 %v1498, %v1546
        %v1548 = vpop.f32.mrb[0].mxu0
        %v1549 = vpop.f32.mrb[0].mxu0
        %v1550 = vadd.f32 %v1501, %v1549
        %v1551 = vpop.f32.mrb[0].mxu0
        %1552 = vdwg.mxu0
        %v1553 = vadd.f32 %v1437, %v1439
        %v1554 = vadd.f32 %v1553, %v1539
        %1555 = vadd.xlane.f32.xlu0 %v1554
        %v1556 = vpop.xlane.xlu0 %1555
        %v1557 = vadd.f32 %v1441, %v1443
        %v1558 = vadd.f32 %v1557, %v1542
        %1559 = vadd.xlane.f32.xlu0 %v1558
        %v1560 = vpop.xlane.xlu0 %1559
        %v1561 = vadd.f32 %v1447, %v1449
        %v1562 = vadd.f32 %v1561, %v1547
        %1563 = vadd.xlane.f32.xlu0 %v1562
        %v1564 = vpop.xlane.xlu0 %1563
        %v1565 = vadd.f32 %v1451, %v1453
        %v1566 = vadd.f32 %v1565, %v1550
        %1567 = vadd.xlane.f32.xlu0 %v1566
        %v1568 = vpop.xlane.xlu0 %1567
        %v1569 = vmul.f32 %v1437, %v1437
        %v1570 = vmul.f32 %v1439, %v1439
        %v1571 = vmul.f32 %v1539, %v1539
        %v1572 = vmul.f32 %v1441, %v1441
        %v1573 = vmul.f32 %v1443, %v1443
        %v1574 = vmul.f32 %v1542, %v1542
        %v1575 = vmul.f32 %v1447, %v1447
        %v1576 = vmul.f32 %v1449, %v1449
        %v1577 = vmul.f32 %v1547, %v1547
        %v1578 = vmul.f32 %v1451, %v1451
        %v1579 = vmul.f32 %v1453, %v1453
        %v1580 = vmul.f32 %v1550, %v1550
        %v1581 = vadd.f32 %v1569, %v1570
        %v1582 = vadd.f32 %v1581, %v1571
        %1583 = vadd.xlane.f32.xlu0 %v1582
        %v1584 = vpop.xlane.xlu0 %1583
        %v1585 = vadd.f32 %v1572, %v1573
        %v1586 = vadd.f32 %v1585, %v1574
        %1587 = vadd.xlane.f32.xlu0 %v1586
        %v1588 = vpop.xlane.xlu0 %1587
        %v1589 = vadd.f32 %v1575, %v1576
        %v1590 = vadd.f32 %v1589, %v1577
        %1591 = vadd.xlane.f32.xlu0 %v1590
        %v1592 = vpop.xlane.xlu0 %1591
        %v1593 = vadd.f32 %v1578, %v1579
        %v1594 = vadd.f32 %v1593, %v1580
        %1595 = vadd.xlane.f32.xlu0 %v1594
        %v1596 = vpop.xlane.xlu0 %1595
        %v1597 = vmul.f32 %v1556, 0.0033333334
        %v1598 = vmul.f32 %v1560, 0.0033333334
        %v1599 = vmul.f32 %v1564, 0.0033333334
        %v1600 = vmul.f32 %v1568, 0.0033333334
        %v1601 = vmul.f32 %v1584, 0.0033333334
        %v1602 = vmul.f32 %v1588, 0.0033333334
        %v1603 = vmul.f32 %v1592, 0.0033333334
        %v1604 = vmul.f32 %v1596, 0.0033333334
        %v1605 = vmul.f32 %v1597, %v1597
        %v1606 = vmul.f32 %v1598, %v1598
        %v1607 = vmul.f32 %v1599, %v1599
        %v1608 = vmul.f32 %v1600, %v1600
        %v1609 = vsub.f32 %v1601, %v1605
        %v1610 = vsub.f32 %v1602, %v1606
        %v1611 = vsub.f32 %v1603, %v1607
        %v1612 = vsub.f32 %v1604, %v1608
        %v1613 = vmax.f32 %v1609, 0.0
        %v1614 = vmax.f32 %v1610, 0.0
        %v1615 = vmax.f32 %v1611, 0.0
        %v1616 = vmax.f32 %v1612, 0.0
        %v1617 = vsub.f32 %v1437, %v1597
        %v1618 = vsub.f32 %v1439, %v1597
        %v1619 = vsub.f32 %v1539, %v1597
        %v1620 = vsub.f32 %v1441, %v1598
        %v1621 = vsub.f32 %v1443, %v1598
        %v1622 = vsub.f32 %v1542, %v1598
        %v1623 = vsub.f32 %v1447, %v1599
        %v1624 = vsub.f32 %v1449, %v1599
        %v1625 = vsub.f32 %v1547, %v1599
        %v1626 = vsub.f32 %v1451, %v1600
        %v1627 = vsub.f32 %v1453, %v1600
        %v1628 = vsub.f32 %v1550, %v1600
        %v1629 = vadd.f32 %v1613, 1e-05
        %v1630 = vadd.f32 %v1614, 1e-05
        %v1631 = vadd.f32 %v1615, 1e-05
        %v1632 = vadd.f32 %v1616, 1e-05
        %v1633 = vrsqrt.pop %v1629
        %v1634 = vrsqrt.pop %v1630
        %v1635 = vrsqrt.pop %v1631
        %v1636 = vrsqrt.pop %v1632
        %v1637 = vmul.f32 %v1617, %v1633
        %v1638 = vmul.f32 %v1618, %v1633
        %v1639 = vmul.f32 %v1619, %v1633
        %v1640 = vmul.f32 %v1620, %v1634
        %v1641 = vmul.f32 %v1621, %v1634
        %v1642 = vmul.f32 %v1622, %v1634
        %v1643 = vmul.f32 %v1623, %v1635
        %v1644 = vmul.f32 %v1624, %v1635
        %v1645 = vmul.f32 %v1625, %v1635
        %v1646 = vmul.f32 %v1626, %v1636
        %v1647 = vmul.f32 %v1627, %v1636
        %v1648 = vmul.f32 %v1628, %v1636
        %v1650 = vlaneseq
        %v1651 = vshrl.u32 %v1650, 7
        %v1652 = vsub.s32 0, %v1651
        %v1653 = vrot.slane %v279, %v1652
        %v1654 = vlaneseq
        %v1655 = vshrl.u32 %v1654, 7
        %v1656 = vsub.s32 1, %v1655
        %v1657 = vrot.slane %v279, %v1656
        %v1658 = vlaneseq
        %v1659 = vshrl.u32 %v1658, 7
        %v1660 = vsub.s32 2, %v1659
        %v1661 = vrot.slane %v279, %v1660
        %v1665 = vmul.f32 %v1637, %v1653
        %v1666 = vmul.f32 %v1638, %v1657
        %v1667 = vmul.f32 %v1639, %v1661
        %v1668 = vmul.f32 %v1640, %v1653
        %v1669 = vmul.f32 %v1641, %v1657
        %v1670 = vmul.f32 %v1642, %v1661
        %v1671 = vmul.f32 %v1643, %v1653
        %v1672 = vmul.f32 %v1644, %v1657
        %v1673 = vmul.f32 %v1645, %v1661
        %v1674 = vmul.f32 %v1646, %v1653
        %v1675 = vmul.f32 %v1647, %v1657
        %v1676 = vmul.f32 %v1648, %v1661
        %v1678 = vlaneseq
        %v1679 = vshrl.u32 %v1678, 7
        %v1680 = vsub.s32 0, %v1679
        %v1681 = vrot.slane %v281, %v1680
        %v1682 = vlaneseq
        %v1683 = vshrl.u32 %v1682, 7
        %v1684 = vsub.s32 1, %v1683
        %v1685 = vrot.slane %v281, %v1684
        %v1686 = vlaneseq
        %v1687 = vshrl.u32 %v1686, 7
        %v1688 = vsub.s32 2, %v1687
        %v1689 = vrot.slane %v281, %v1688
        %v1693 = vadd.f32 %v1665, %v1681
        %v1694 = vadd.f32 %v1666, %v1685
        %v1695 = vadd.f32 %v1667, %v1689
        %v1696 = vadd.f32 %v1668, %v1681
        %v1697 = vadd.f32 %v1669, %v1685
        %v1698 = vadd.f32 %v1670, %v1689
        %v1699 = vadd.f32 %v1671, %v1681
        %v1700 = vadd.f32 %v1672, %v1685
        %v1701 = vadd.f32 %v1673, %v1689
        %v1702 = vadd.f32 %v1674, %v1681
        %v1703 = vadd.f32 %v1675, %v1685
        %v1704 = vadd.f32 %v1676, %v1689
        %v1705 = vmax.f32 %v1693, 0.0
        %v1706 = vmax.f32 %v1694, 0.0
        %v1707 = vmax.f32 %v1695, 0.0
        %v1708 = vmax.f32 %v1696, 0.0
        %v1709 = vmax.f32 %v1697, 0.0
        %v1710 = vmax.f32 %v1698, 0.0
        %v1711 = vmax.f32 %v1699, 0.0
        %v1712 = vmax.f32 %v1700, 0.0
        %v1713 = vmax.f32 %v1701, 0.0
        %v1714 = vmax.f32 %v1702, 0.0
        %v1715 = vmax.f32 %v1703, 0.0
        %v1716 = vmax.f32 %v1704, 0.0
        %v1717 = vpack.c.bf16 %v1708, %v1705
        %v1718 = vpack.c.bf16 %v1709, %v1706
        %v1719 = vpack.c.bf16 %v1710, %v1707
        %v1720 = vpack.c.bf16 %v1714, %v1711
        %v1721 = vpack.c.bf16 %v1715, %v1712
        %v1722 = vpack.c.bf16 %v1716, %v1713
        %v1723 = vld [vmem:[#allocation7] sm:$0xf]
        %v1724 = vld [vmem:[#allocation7 + $0x4] sm:$0xf]
        %v1725 = vld [vmem:[#allocation7 + $0x8] sm:$0xf]
        %v1726 = vld [vmem:[#allocation7 + $0xc] sm:$0xf]
        %v1727 = vld [vmem:[#allocation7 + $0x10] sm:$0xf]
        %v1728 = vld [vmem:[#allocation7 + $0x14] sm:$0xf]
        %v1729 = vld [vmem:[#allocation7 + $0x18] sm:$0xf]
        %v1730 = vld [vmem:[#allocation7 + $0x1c] sm:$0xf]
        %v1731 = vld [vmem:[#allocation7 + $0x20] sm:$0xf]
        %v1732 = vld [vmem:[#allocation7 + $0x24] sm:$0xf]
        %v1733 = vld [vmem:[#allocation7 + $0x28] sm:$0xf]
        %v1734 = vld [vmem:[#allocation7 + $0x2c] sm:$0xf]
        %v1735 = vld [vmem:[#allocation7 + $0x30] sm:$0xf]
        %v1736 = vld [vmem:[#allocation7 + $0x34] sm:$0xf]
        %v1737 = vld [vmem:[#allocation7 + $0x38] sm:$0xf]
        %v1738 = vld [vmem:[#allocation7 + $0x3c] sm:$0xf]
        %v1739 = vld [vmem:[#allocation7 + $0x40] sm:$0xf]
        %v1740 = vld [vmem:[#allocation7 + $0x44] sm:$0xf]
        %v1741 = vld [vmem:[#allocation7 + $0x48] sm:$0xf]
        %v1742 = vld [vmem:[#allocation7 + $0x4c] sm:$0xf]
        %v1743 = vld [vmem:[#allocation7 + $0x50] sm:$0xf]
        %v1744 = vld [vmem:[#allocation7 + $0x54] sm:$0xf]
        %v1745 = vld [vmem:[#allocation7 + $0x58] sm:$0xf]
        %v1746 = vld [vmem:[#allocation7 + $0x5c] sm:$0xf]
        %v1747 = vld [vmem:[#allocation7 + $0x60] sm:$0xf]
        %v1748 = vld [vmem:[#allocation7 + $0x64] sm:$0xf]
        %v1749 = vld [vmem:[#allocation7 + $0x68] sm:$0xf]
        %v1750 = vld [vmem:[#allocation7 + $0x6c] sm:$0xf]
        %v1751 = vld [vmem:[#allocation7 + $0x70] sm:$0xf]
        %v1752 = vld [vmem:[#allocation7 + $0x74] sm:$0xf]
        %v1753 = vld [vmem:[#allocation7 + $0x78] sm:$0xf]
        %v1754 = vld [vmem:[#allocation7 + $0x7c] sm:$0xf]
        %v1755 = vld [vmem:[#allocation7 + $0x80] sm:$0xf]
        %v1756 = vld [vmem:[#allocation7 + $0x84] sm:$0xf]
        %v1757 = vld [vmem:[#allocation7 + $0x88] sm:$0xf]
        %v1758 = vld [vmem:[#allocation7 + $0x8c] sm:$0xf]
        %v1759 = vld [vmem:[#allocation7 + $0x90] sm:$0xf]
        %v1760 = vld [vmem:[#allocation7 + $0x94] sm:$0xf]
        %v1761 = vld [vmem:[#allocation7 + $0x98] sm:$0xf]
        %v1762 = vld [vmem:[#allocation7 + $0x9c] sm:$0xf]
        %v1763 = vld [vmem:[#allocation7 + $0xa0] sm:$0xf]
        %v1764 = vld [vmem:[#allocation7 + $0xa4] sm:$0xf]
        %v1765 = vld [vmem:[#allocation7 + $0xa8] sm:$0xf]
        %v1766 = vld [vmem:[#allocation7 + $0xac] sm:$0xf]
        %v1767 = vld [vmem:[#allocation7 + $0xb0] sm:$0xf]
        %v1768 = vld [vmem:[#allocation7 + $0xb4] sm:$0xf]
        %v1769 = vld [vmem:[#allocation7 + $0xb8] sm:$0xf]
        %v1770 = vld [vmem:[#allocation7 + $0xbc] sm:$0xf]
        %v1819 = vunpack.c.l.b16 %v1723
        %v1820 = vunpack.c.l.b16 %v1724
        %v1821 = vunpack.c.l.b16 %v1725
        %v1822 = vunpack.c.l.b16 %v1726
        %v1823 = vunpack.c.l.b16 %v1727
        %v1824 = vunpack.c.l.b16 %v1728
        %v1825 = vunpack.c.l.b16 %v1729
        %v1826 = vunpack.c.l.b16 %v1730
        %v1827 = vunpack.c.l.b16 %v1731
        %v1828 = vunpack.c.l.b16 %v1732
        %v1829 = vunpack.c.l.b16 %v1733
        %v1830 = vunpack.c.l.b16 %v1734
        %v1831 = vunpack.c.l.b16 %v1735
        %v1832 = vunpack.c.l.b16 %v1736
        %v1833 = vunpack.c.l.b16 %v1737
        %v1834 = vunpack.c.l.b16 %v1738
        %v1835 = vunpack.c.l.b16 %v1739
        %v1836 = vunpack.c.l.b16 %v1740
        %v1837 = vunpack.c.l.b16 %v1741
        %v1838 = vunpack.c.l.b16 %v1742
        %v1839 = vunpack.c.l.b16 %v1743
        %v1840 = vunpack.c.l.b16 %v1744
        %v1841 = vunpack.c.l.b16 %v1745
        %v1842 = vunpack.c.l.b16 %v1746
        %v1843 = vunpack.c.l.b16 %v1747
        %v1844 = vunpack.c.l.b16 %v1748
        %v1845 = vunpack.c.l.b16 %v1749
        %v1846 = vunpack.c.l.b16 %v1750
        %v1847 = vunpack.c.l.b16 %v1751
        %v1848 = vunpack.c.l.b16 %v1752
        %v1849 = vunpack.c.l.b16 %v1753
        %v1850 = vunpack.c.l.b16 %v1754
        %v1851 = vunpack.c.l.b16 %v1755
        %v1852 = vunpack.c.l.b16 %v1756
        %v1853 = vunpack.c.l.b16 %v1757
        %v1854 = vunpack.c.l.b16 %v1758
        %v1855 = vunpack.c.l.b16 %v1759
        %v1856 = vunpack.c.l.b16 %v1760
        %v1857 = vunpack.c.l.b16 %v1761
        %v1858 = vunpack.c.l.b16 %v1762
        %v1859 = vunpack.c.l.b16 %v1763
        %v1860 = vunpack.c.l.b16 %v1764
        %v1861 = vunpack.c.l.b16 %v1765
        %v1862 = vunpack.c.l.b16 %v1766
        %v1863 = vunpack.c.l.b16 %v1767
        %v1864 = vunpack.c.l.b16 %v1768
        %v1865 = vunpack.c.l.b16 %v1769
        %v1866 = vunpack.c.l.b16 %v1770
        %v1867 = vpack.c.b16 %v1820, %v1819
        %v1868 = vpack.c.b16 %v1822, %v1821
        %v1869 = vpack.c.b16 %v1824, %v1823
        %v1870 = vpack.c.b16 %v1826, %v1825
        %v1871 = vpack.c.b16 %v1828, %v1827
        %v1872 = vpack.c.b16 %v1830, %v1829
        %v1873 = vpack.c.b16 %v1832, %v1831
        %v1874 = vpack.c.b16 %v1834, %v1833
        %v1875 = vpack.c.b16 %v1836, %v1835
        %v1876 = vpack.c.b16 %v1838, %v1837
        %v1877 = vpack.c.b16 %v1840, %v1839
        %v1878 = vpack.c.b16 %v1842, %v1841
        %v1879 = vpack.c.b16 %v1844, %v1843
        %v1880 = vpack.c.b16 %v1846, %v1845
        %v1881 = vpack.c.b16 %v1848, %v1847
        %v1882 = vpack.c.b16 %v1850, %v1849
        %v1883 = vpack.c.b16 %v1852, %v1851
        %v1884 = vpack.c.b16 %v1854, %v1853
        %v1885 = vpack.c.b16 %v1856, %v1855
        %v1886 = vpack.c.b16 %v1858, %v1857
        %v1887 = vpack.c.b16 %v1860, %v1859
        %v1888 = vpack.c.b16 %v1862, %v1861
        %v1889 = vpack.c.b16 %v1864, %v1863
        %v1890 = vpack.c.b16 %v1866, %v1865
        %1915 = vmatprep.subr.bf16.mxu0 0
        %1916 = vmatpush1.bf16.msra.mxu0 %v1867
        %1917 = vmatprep.subr.bf16.mxu0 0
        %1918 = vmatpush1.bf16.msra.mxu0 %v1868
        %1919 = vmatprep.subr.bf16.mxu0 0
        %1920 = vmatpush1.bf16.msra.mxu0 %v1869
        %1921 = vmatprep.subr.bf16.mxu0 0
        %1922 = vmatpush1.bf16.msra.mxu0 %v1870
        %1923 = vmatprep.subr.bf16.mxu0 0
        %1924 = vmatpush1.bf16.msra.mxu0 %v1871
        %1925 = vmatprep.subr.bf16.mxu0 0
        %1926 = vmatpush1.bf16.msra.mxu0 %v1872
        %1927 = vmatprep.subr.bf16.mxu0 0
        %1928 = vmatpush1.bf16.msra.mxu0 %v1873
        %1929 = vmatprep.subr.bf16.mxu0 0
        %1930 = vmatpush1.bf16.msra.mxu0 %v1874
        %1931 = vmatprep.subr.bf16.mxu0 0
        %1932 = vmatpush1.bf16.msra.mxu0 %v1875
        %1933 = vmatprep.subr.bf16.mxu0 0
        %1934 = vmatpush1.bf16.msra.mxu0 %v1876
        %1935 = vmatprep.subr.bf16.mxu0 0
        %1936 = vmatpush1.bf16.msra.mxu0 %v1877
        %1937 = vmatprep.subr.bf16.mxu0 0
        %1938 = vmatpush1.bf16.msra.mxu0 %v1878
        %1939 = vmatprep.subr.bf16.mxu0 0
        %1940 = vmatpush1.bf16.msra.mxu0 %v1879
        %1941 = vmatprep.subr.bf16.mxu0 0
        %1942 = vmatpush1.bf16.msra.mxu0 %v1880
        %1943 = vmatprep.subr.bf16.mxu0 0
        %1944 = vmatpush1.bf16.msra.mxu0 %v1881
        %1945 = vmatprep.subr.bf16.mxu0 0
        %1946 = vmatpush1.bf16.msra.mxu0 %v1882
        %1947 = vmatprep.mubr.bf16.mxu0 %v1718
        %1948 = vmatmul.mubr.bf16.gmra.mrb[0].mxu0 %v1717
        %v1949 = vpop.f32.mrb[0].mxu0
        %v1950 = vadd.f32 %v282, %v1949
        %v1951 = vpop.f32.mrb[0].mxu0
        %v1952 = vpop.f32.mrb[0].mxu0
        %v1953 = vadd.f32 %v282, %v1952
        %v1954 = vpop.f32.mrb[0].mxu0
        %1955 = vmatprep.mubr.bf16.mxu0 %v1721
        %1956 = vmatmul.mubr.bf16.gmra.mrb[0].mxu0 %v1720
        %v1957 = vpop.f32.mrb[0].mxu0
        %v1958 = vadd.f32 %v282, %v1957
        %v1959 = vpop.f32.mrb[0].mxu0
        %v1960 = vpop.f32.mrb[0].mxu0
        %v1961 = vadd.f32 %v282, %v1960
        %v1962 = vpop.f32.mrb[0].mxu0
        %1963 = vdwg.mxu0
        %1964 = vmatprep.subr.bf16.mxu0 0
        %1965 = vmatpush1.bf16.msra.mxu0 %v1883
        %1966 = vmatprep.subr.bf16.mxu0 0
        %1967 = vmatpush1.bf16.msra.mxu0 %v1884
        %1968 = vmatprep.subr.bf16.mxu0 0
        %1969 = vmatpush1.bf16.msra.mxu0 %v1885
        %1970 = vmatprep.subr.bf16.mxu0 0
        %1971 = vmatpush1.bf16.msra.mxu0 %v1886
        %1972 = vmatprep.subr.bf16.mxu0 0
        %1973 = vmatpush1.bf16.msra.mxu0 %v1887
        %1974 = vmatprep.subr.bf16.mxu0 0
        %1975 = vmatpush1.bf16.msra.mxu0 %v1888
        %1976 = vmatprep.subr.bf16.mxu0 0
        %1977 = vmatpush1.bf16.msra.mxu0 %v1889
        %1978 = vmatprep.subr.bf16.mxu0 0
        %1979 = vmatpush1.bf16.msra.mxu0 %v1890
        %1980 = vmatprep.subr.bf16.mxu0 0
        %1981 = vmatpush1.bf16.msra.mxu0 0
        %1982 = vmatprep.subr.bf16.mxu0 0
        %1983 = vmatpush1.bf16.msra.mxu0 0
        %1984 = vmatprep.subr.bf16.mxu0 0
        %1985 = vmatpush1.bf16.msra.mxu0 0
        %1986 = vmatprep.subr.bf16.mxu0 0
        %1987 = vmatpush1.bf16.msra.mxu0 0
        %1988 = vmatprep.subr.bf16.mxu0 0
        %1989 = vmatpush1.bf16.msra.mxu0 0
        %1990 = vmatprep.subr.bf16.mxu0 0
        %1991 = vmatpush1.bf16.msra.mxu0 0
        %1992 = vmatprep.subr.bf16.mxu0 0
        %1993 = vmatpush1.bf16.msra.mxu0 0
        %1994 = vmatprep.subr.bf16.mxu0 0
        %1995 = vmatpush1.bf16.msra.mxu0 0
        %1996 = vmatprep.mubr.bf16.mxu0 0
        %1997 = vmatmul.mubr.bf16.gmra.mrb[0].mxu0 %v1719
        %v1998 = vpop.f32.mrb[0].mxu0
        %v1999 = vadd.f32 %v1950, %v1998
        %v2000 = vpop.f32.mrb[0].mxu0
        %v2001 = vpop.f32.mrb[0].mxu0
        %v2002 = vadd.f32 %v1953, %v2001
        %v2003 = vpop.f32.mrb[0].mxu0
        %2004 = vmatprep.mubr.bf16.mxu0 0
        %2005 = vmatmul.mubr.bf16.gmra.mrb[0].mxu0 %v1722
        %v2006 = vpop.f32.mrb[0].mxu0
        %v2007 = vadd.f32 %v1958, %v2006
        %v2008 = vpop.f32.mrb[0].mxu0
        %v2009 = vpop.f32.mrb[0].mxu0
        %v2010 = vadd.f32 %v1961, %v2009
        %v2011 = vpop.f32.mrb[0].mxu0
        %2012 = vdwg.mxu0
        %v2013 = vtanh.pop %v1999
        %v2014 = vtanh.pop %v2002
        %v2015 = vtanh.pop %v2007
        %v2016 = vtanh.pop %v2010
        %2017 = vst [vmem:[%s262] sm:$0xff] %v2013
        %2018 = vst [vmem:[%s262 + $0x8] sm:$0xff] %v2014
        %2019 = vst [vmem:[%s262 + $0x10] sm:$0xff] %v2015
        %2020 = vst [vmem:[%s262 + $0x18] sm:$0xff] %v2016
        %s2021 = sand.u32 %s139, 1
        %s2022 = scalar_lea.sflag [#allocation4], %s2021
        %s2023 = sand.u32 %s139, 1
        %s2024 = smul.addr %s2023, 32
        %s2025 = scalar_lea.vmem [#allocation8], %s2024
        // Predicated region
        $region53: #{tpu_custom_call.1} parent=39 // pred_check
          %p2026 = pneg %p149
        $region54: #{tpu_custom_call.1} parent=39 // pred_check_branch
          %2028 = sbr.rel (%p2026) target = $region56
        $region55: #{tpu_custom_call.1} parent=39 // pred_region
          %s2029 = smul.u32 4, %s21
          %s2031 = ssub.s32 512, 512
          %2032 = vsyncadd %s2022, %s2031
          %s2033 = smul.addr %s2029, 128
          %s2034 = scalar_lea.hbm %s5, %s2033
          %s2035 = sshll.u32 %s2025, 4
          %s2036 = int_to_ptr.vmem [resolvable:$true] %s2035
          %2041 = dma.vmem_to_hbm [thread:$0]  %s2036, 512, %s2034, %s2022, 128, 128, 8
        $region56: #{tpu_custom_call.1} parent=39 // pred_fallthru
          _
      $region40: #{tpu_custom_call.1} parent=5 // pred_fallthru
        _
      %p2042 = scmp.le.s32.totalorder 2, %s16
      // Predicated region
      $region57: #{tpu_custom_call.1} parent=5 // pred_check
        %p2043 = pneg %p2042
      $region58: #{tpu_custom_call.1} parent=5 // pred_check_branch
        %2045 = sbr.rel (%p2043) target = $region60
      $region59: #{tpu_custom_call.1} parent=5 // pred_region
        %s2046 = ssub.s32 %s16, 2
        // Predicated region
        $region61: #{tpu_custom_call.1} parent=59 // pred_check
          %p2047 = pneg %p155
        $region62: #{tpu_custom_call.1} parent=59 // pred_check_branch
          %2049 = sbr.rel (%p2047) target = $region64
        $region63: #{tpu_custom_call.1} parent=59 // pred_region
          %s2050 = sand.u32 %s140, 1
          %s2051 = scalar_lea.sflag [#allocation4], %s2050
          %s2052 = sand.u32 %s140, 1
          %s2053 = smul.addr %s2052, 32
          %s2054 = scalar_lea.vmem [#allocation8], %s2053
          %2055 = dma.done %s2051, 512
        $region64: #{tpu_custom_call.1} parent=59 // pred_fallthru
          _
      $region60: #{tpu_custom_call.1} parent=5 // pred_fallthru
        _
    $region6: #{tpu_custom_call.1} parent=1 // loop_footer
      %s20 = sadd.s32 1, %s16
    $region7: #{tpu_custom_call.1} parent=1 // loop_footer_branch
      %15 = sbr.rel target = $region3
    $region8: #{tpu_custom_call.1} parent=1 // loop_exit
      _
    %2056 = vsyncpa [#allocation3], 1
    %s2057 = scalar_lea.sflag [#allocation3], 1
    %2058 = vsyncpa %s2057, 1
    %2059 = vsyncpa [#allocation6], 1
    %2060 = vsyncpa [#allocation4], 1
    %s2061 = scalar_lea.sflag [#allocation4], 1
    %2062 = vsyncpa %s2061, 1

</llo_original>
